<compile_context>
chip_gen: v7x
topology: tpu7x:2x2x1
jax: 0.10.0
libtpu: 0.0.40
codegen_flags: <defaults>
</compile_context>

<pallas_src>
import functools

import jax
import jax.numpy as jnp
from jax import lax
from jax.experimental import pallas as pl
from jax.experimental.pallas import tpu as pltpu


def _round_up(a, b):
    return (a + b - 1) // b * b


def _vmem_budget_bytes():
    """Scoped-VMEM budget with headroom: ~96 MiB on v5e/v6e (128 MiB), ~48 MiB on v7x (64 MiB)."""
    cap = 64 * 1024 * 1024  # conservative (v7x per-TC) default if the query fails
    try:
        info = pltpu.get_tpu_info()
        cap = int(getattr(info, "vmem_capacity_bytes", cap)) or cap
    except Exception:
        pass
    budget = int(cap * 0.75)
    return max(32 * 1024 * 1024, min(budget, 100 * 1024 * 1024))


def _pick_cout_tile(cout):
    """Tile large Cout (multiple of 128/256) so the weight block stays bounded; else full."""
    for t in (256, 128):
        if cout % t == 0 and cout > t:
            return t
    return cout


# ----------------------------------------------------------------------------
# Kernels
# ----------------------------------------------------------------------------
def _conv_taps_kernel(x_ref, w_ref, b_ref, o_ref, *, tap_offsets, m_lane, relu):
    """Stride-1 conv as a sum of per-tap GEMMs over a flattened padded image.

    x_ref : (Cin, Lin)        flattened zero-padded image of one batch element (read once)
    w_ref : (T, Cout_t, Cin)  per-tap weight slabs (BN folded), resident across batch steps
    b_ref : (Cout_t, 1)       f32 bias
    o_ref : (Cout_t, M)       lane-dense flat output slab (junk columns sliced off outside)
    """
    x = x_ref[...]
    acc = None
    for t, off in enumerate(tap_offsets):            # unrolled: T = KH*KW static taps
        xt = x[:, off:off + m_lane]                  # static lane-offset slice (XLU shift)
        part = jnp.dot(w_ref[t], xt, preferred_element_type=jnp.float32)  # MXU, f32 acc
        acc = part if acc is None else acc + part
    acc = acc + b_ref[...]
    if relu:
        acc = jnp.maximum(acc, 0.0)
    o_ref[...] = acc.astype(o_ref.dtype)


def _gemm_bias_relu_kernel(p_ref, w_ref, b_ref, o_ref, *, relu):
    # p_ref : (K, TM)     im2col patch slab tile (fallback path)
    # w_ref : (Cout, K)   reshaped conv weight (BN already folded)
    # b_ref : (Cout, 1)   bias
    # o_ref : (Cout, TM)  lane-dense output tile
    acc = jnp.dot(w_ref[...], p_ref[...], preferred_element_type=jnp.float32)
    acc = acc + b_ref[...]
    if relu:
        acc = jnp.maximum(acc, 0.0)
    o_ref[...] = acc.astype(o_ref.dtype)


# ----------------------------------------------------------------------------
# Fast path: stride == 1, no im2col materialization (taps handled in-kernel)
# ----------------------------------------------------------------------------
def _conv_flat_path(x_nchw, weight_f32, bias_f32, *, padding, dilation, relu,
                    compute_dtype, out_dtype, vmem_budget):
    n, cin, h, w = x_nchw.shape
    cout, _, kh_sz, kw_sz = weight_f32.shape
    hp, wp = h + 2 * padding, w + 2 * padding
    ho = hp - dilation * (kh_sz - 1)
    wo = wp - dilation * (kw_sz - 1)
    taps = kh_sz * kw_sz

    m_lane = _round_up(ho * wp, 128)                          # lane-dense flat output width
    max_off = dilation * (kh_sz - 1) * wp + dilation * (kw_sz - 1)
    lin = _round_up(m_lane + max_off, 128)                    # flat input length incl. halo

    cout_t = _pick_cout_tile(cout)
    cb = jnp.dtype(compute_dtype).itemsize
    ob = jnp.dtype(out_dtype).itemsize
    need = (2 * cin * lin * cb                 # x block, double-buffered
            + 2 * taps * cout_t * cin * cb     # weight block
            + 2 * cout_t * m_lane * ob         # output block
            + cout_t * m_lane * 4              # f32 accumulator
            + 2 * cin * m_lane * cb)           # per-tap slice temporaries
    if need > 0.85 * vmem_budget:
        return None                            # caller falls back to tiled im2col path

    # Cast BEFORE layout glue so XLA never writes an f32 copy it immediately re-reads.
    xc = x_nchw.astype(compute_dtype)
    x_pad = jnp.pad(xc, ((0, 0), (0, 0), (padding, padding), (padding, padding)))
    x_flat = x_pad.reshape(n, cin, hp * wp)
    x_flat = jnp.pad(x_flat, ((0, 0), (0, 0), (0, lin - hp * wp)))

    w_taps = jnp.transpose(weight_f32, (2, 3, 0, 1)).astype(compute_dtype)
    w_taps = w_taps.reshape(taps, cout, cin)                  # (T, Cout, Cin)
    b2d = bias_f32.reshape(cout, 1)

    tap_offsets = tuple(dilation * (kh * wp + kw)
                        for kh in range(kh_sz) for kw in range(kw_sz))

    kernel = functools.partial(_conv_taps_kernel, tap_offsets=tap_offsets,
                               m_lane=m_lane, relu=relu)
    n_co = cout // cout_t
    cost = pl.CostEstimate(
        flops=2 * n * cout * cin * taps * m_lane,
        bytes_accessed=n * cin * lin * cb + taps * cout * cin * cb + n * cout * m_lane * ob,
        transcendentals=0)

    # TODO(synk): for N == 1 and a single Cout tile the grid has one step, leaving a v7x
    # TensorCore idle; a spatial split of m_lane could be added for that case.
    out_flat = pl.pallas_call(
        kernel,
        out_shape=jax.ShapeDtypeStruct((n, cout, m_lane), out_dtype),
        grid_spec=pltpu.PrefetchScalarGridSpec(
            num_scalar_prefetch=0,
            grid=(n_co, n),                                   # (Cout tiles, batch)
            in_specs=[
                pl.BlockSpec((None, cin, lin), lambda co, b: (b, 0, 0)),     # activations
                pl.BlockSpec((taps, cout_t, cin), lambda co, b: (0, co, 0)),  # weights
                pl.BlockSpec((cout_t, 1), lambda co, b: (co, 0)),             # bias
            ],
            out_specs=pl.BlockSpec((None, cout_t, m_lane), lambda co, b: (b, co, 0)),
        ),
        compiler_params=pltpu.CompilerParams(
            dimension_semantics=("parallel", "parallel"),     # v7x: 2 TCs split (co, b)
            vmem_limit_bytes=int(vmem_budget)),
        cost_estimate=cost,
    )(x_flat, w_taps, b2d)

    # Drop junk columns (wo >= Wo) and lane padding; output is already NCHW-ordered.
    out = out_flat[:, :, :ho * wp].reshape(n, cout, ho, wp)[:, :, :, :wo]
    return out


# ----------------------------------------------------------------------------
# Fallback path: generic stride/dilation via tiled im2col GEMM
# ----------------------------------------------------------------------------
def _conv_im2col_path(x_nchw, weight_f32, bias_f32, *, stride, padding, dilation, relu,
                      compute_dtype, out_dtype, vmem_budget):
    n, cin, h, w = x_nchw.shape
    cout, _, kh_sz, kw_sz = weight_f32.shape
    ho = (h + 2 * padding - dilation * (kh_sz - 1) - 1) // stride + 1
    wo = (w + 2 * padding - dilation * (kw_sz - 1) - 1) // stride + 1

    # Cast BEFORE im2col so the patch slab is written once at compute precision.
    # TODO(synk): the slab is still materialized here; allow_input_fusion could remove it.
    xc = x_nchw.astype(compute_dtype)
    wc = weight_f32.astype(compute_dtype)

    x_cnhw = jnp.transpose(xc, (1, 0, 2, 3))
    x_pad = jnp.pad(x_cnhw, ((0, 0), (0, 0), (padding, padding), (padding, padding)))
    tap_list = []
    for kh in range(kh_sz):
        for kw in range(kw_sz):
            h0, w0 = kh * dilation, kw * dilation
            tap_list.append(lax.slice(
                x_pad, (0, 0, h0, w0),
                (cin, n, h0 + (ho - 1) * stride + 1, w0 + (wo - 1) * stride + 1),
                (1, 1, stride, stride)))
    k_total = cin * kh_sz * kw_sz
    m_total = n * ho * wo
    patches = jnp.stack(tap_list, axis=1).reshape(k_total, m_total)

    w2d = wc.reshape(cout, k_total)
    b2d = bias_f32.reshape(cout, 1)

    cb = jnp.dtype(compute_dtype).itemsize
    ob = jnp.dtype(out_dtype).itemsize

    # Lane tile: big (near HBM roofline) but bounded by the per-chip VMEM budget.
    tm = 2048 if k_total <= 512 else 1024
    tm = min(tm, _round_up(m_total, 128))

    def step_bytes(t):
        return 2 * k_total * t * cb + 2 * cout * t * ob + cout * k_total * cb + cout * t * 4

    while tm > 128 and step_bytes(tm) > 0.6 * vmem_budget:
        tm //= 2
    tm = max(tm, 128)
    m_pad = _round_up(m_total, tm)
    # v7x: prefer >= 2 parallel lane tiles so both TensorCores get work.
    while m_pad // tm < 2 and tm > 128:
        tm //= 2
        m_pad = _round_up(m_total, tm)
    if m_pad != m_total:
        patches = jnp.pad(patches, ((0, 0), (0, m_pad - m_total)))

    kernel = functools.partial(_gemm_bias_relu_kernel, relu=relu)
    cost = pl.CostEstimate(
        flops=2 * cout * k_total * m_pad,
        bytes_accessed=k_total * m_pad * cb + cout * k_total * cb + cout * m_pad * ob,
        transcendentals=0)

    out2d = pl.pallas_call(
        kernel,
        out_shape=jax.ShapeDtypeStruct((cout, m_pad), out_dtype),
        grid_spec=pltpu.PrefetchScalarGridSpec(
            num_scalar_prefetch=0,
            grid=(m_pad // tm,),
            in_specs=[
                pl.BlockSpec((k_total, tm), lambda i: (0, i)),    # patches tile (streamed)
                pl.BlockSpec((cout, k_total), lambda i: (0, 0)),  # weight, resident
                pl.BlockSpec((cout, 1), lambda i: (0, 0)),        # bias, resident
            ],
            out_specs=pl.BlockSpec((cout, tm), lambda i: (0, i)),
        ),
        compiler_params=pltpu.CompilerParams(
            dimension_semantics=("parallel",),
            vmem_limit_bytes=int(vmem_budget)),
        cost_estimate=cost,
    )(patches, w2d, b2d)

    out = out2d[:, :m_total].reshape(cout, n, ho, wo)
    return jnp.transpose(out, (1, 0, 2, 3))


# ----------------------------------------------------------------------------
# Public forward
# ----------------------------------------------------------------------------
def basic_conv_forward(x_nchw, weight_oihw, bias=None, *, stride=1, padding=0,
                       dilation=1, groups=1, relu=True, bn_params=None,
                       up_size=None, compute_dtype=None):
    """Forward of BasicConv: conv2d (+ folded eval-BN) + bias + ReLU (+ bilinear upsample).

    compute_dtype: GEMM operand dtype. Default bf16 (f32 accumulation) per v6e/v7x
    recommendation; pass jnp.float32 for exact-f32 math.
    """
    assert groups == 1, "groups != 1 not implemented"  # TODO(synk): grouped conv
    n, cin, h, w = x_nchw.shape
    cout, cin_w, kh_sz, kw_sz = weight_oihw.shape
    assert cin_w == cin
    out_dtype = x_nchw.dtype
    if compute_dtype is None:
        compute_dtype = jnp.bfloat16   # bf16-native MXU; halves the dominant HBM stream

    weight = weight_oihw.astype(jnp.float32)
    if bias is None:
        bias = jnp.zeros((cout,), jnp.float32)  # BasicConv(bn=True) usually has bias=False
    bias = bias.astype(jnp.float32)
    if bn_params is not None:
        # Fold eval-mode (running-stats) BatchNorm into weight/bias.
        # TODO(synk): training-mode BN (batch statistics) is not reproduced here.
        gamma, beta, r_mean, r_var, eps = bn_params
        scale = gamma / jnp.sqrt(r_var + eps)
        weight = weight * scale[:, None, None, None]
        bias = (bias - r_mean) * scale + beta

    vmem_budget = _vmem_budget_bytes()

    out_nchw = None
    if stride == 1:
        out_nchw = _conv_flat_path(
            x_nchw, weight, bias, padding=padding, dilation=dilation, relu=relu,
            compute_dtype=compute_dtype, out_dtype=out_dtype, vmem_budget=vmem_budget)
    if out_nchw is None:
        out_nchw = _conv_im2col_path(
            x_nchw, weight, bias, stride=stride, padding=padding, dilation=dilation,
            relu=relu, compute_dtype=compute_dtype, out_dtype=out_dtype,
            vmem_budget=vmem_budget)

    if up_size is not None:
        # F.interpolate(mode='bilinear', align_corners=False) == jax.image.resize 'bilinear'.
        # TODO(synk): bilinear upsample not fused into the kernel epilogue (extra HBM pass).
        out_nchw = jax.image.resize(
            out_nchw, (n, cout, up_size[0], up_size[1]), method="bilinear")
    return out_nchw


if __name__ == "__main__":
    # BasicConv(in_planes=4, out_planes=8, kernel_size=3, stride=1, padding=1, ...)
    N, CIN, H, W = 2, 4, 16, 16
    COUT, K, PAD = 8, 3, 1

    key = jax.random.PRNGKey(0)
    kx, kw_, kb = jax.random.split(key, 3)
    x = jax.random.normal(kx, (N, CIN, H, W), dtype=jnp.float32)
    weight = jax.random.normal(kw_, (COUT, CIN, K, K), dtype=jnp.float32) * 0.1
    bias = jax.random.normal(kb, (COUT,), dtype=jnp.float32) * 0.1

    def conv_ref_fn(xx, ww, bb, stride, pad, relu=True):
        r = lax.conv_general_dilated(
            xx, ww, window_strides=(stride, stride), padding=((pad, pad), (pad, pad)),
            dimension_numbers=("NCHW", "OIHW", "NCHW"))
        if bb is not None:
            r = r + bb[None, :, None, None]
        if relu:
            r = jnp.maximum(r, 0.0)
        return r

    # --- stride 1: flat-GEMM fast path (exact f32 math) ---
    out = basic_conv_forward(x, weight, bias, stride=1, padding=PAD, relu=True,
                             compute_dtype=jnp.float32)
    out = jax.block_until_ready(out)
    ref = conv_ref_fn(x, weight, bias, 1, PAD)
    assert out.shape == (N, COUT, H, W), out.shape
    assert jnp.allclose(out, ref, atol=1e-4, rtol=1e-4), "mismatch vs reference (stride 1)"

    # --- stride 2: tiled im2col fallback path ---
    out_s2 = basic_conv_forward(x, weight, bias, stride=2, padding=PAD, relu=True,
                                compute_dtype=jnp.float32)
    out_s2 = jax.block_until_ready(out_s2)
    ref_s2 = conv_ref_fn(x, weight, bias, 2, PAD)
    assert jnp.allclose(out_s2, ref_s2, atol=1e-4, rtol=1e-4), "mismatch vs reference (stride 2)"

    # --- eval-mode BN folded, bias=None (BasicConv(..., bn=True, bias=False)) ---
    kg, kbt, kmn, kvr = jax.random.split(jax.random.PRNGKey(1), 4)
    gamma = 1.0 + 0.1 * jax.random.normal(kg, (COUT,), jnp.float32)
    beta = 0.1 * jax.random.normal(kbt, (COUT,), jnp.float32)
    r_mean = 0.1 * jax.random.normal(kmn, (COUT,), jnp.float32)
    r_var = jax.random.uniform(kvr, (COUT,), jnp.float32, minval=0.5, maxval=1.5)
    eps = 1e-5
    out_bn = basic_conv_forward(x, weight, None, stride=1, padding=PAD, relu=True,
                                bn_params=(gamma, beta, r_mean, r_var, eps),
                                compute_dtype=jnp.float32)
    out_bn = jax.block_until_ready(out_bn)
    conv_raw = conv_ref_fn(x, weight, None, 1, PAD, relu=False)
    bn_ref = (conv_raw - r_mean[None, :, None, None]) * (
        gamma / jnp.sqrt(r_var + eps))[None, :, None, None] + beta[None, :, None, None]
    bn_ref = jnp.maximum(bn_ref, 0.0)
    assert jnp.allclose(out_bn, bn_ref, atol=1e-4, rtol=1e-3), "mismatch vs reference (bn)"

    # --- default bf16 operands (perf recommendation), f32 accumulation: loose tolerance ---
    out_bf16 = basic_conv_forward(x, weight, bias, stride=1, padding=PAD, relu=True)
    out_bf16 = jax.block_until_ready(out_bf16)
    assert jnp.allclose(out_bf16, ref, atol=5e-2, rtol=5e-2), "mismatch vs reference (bf16)"

    # --- upsample path (shape check) ---
    out_up = basic_conv_forward(x, weight, bias, stride=1, padding=PAD, relu=True,
                                up_size=(32, 32), compute_dtype=jnp.float32)
    out_up = jax.block_until_ready(out_up)
    assert out_up.shape == (N, COUT, 32, 32), out_up.shape

    print("KERNEL_OK")
</pallas_src>

<mosaic_0001>
module attributes {stable_mosaic.version = 11 : i64} {
  func.func @_conv_taps_kernel(%arg0: i32, %arg1: i32, %arg2: memref<1x4x512xf32, #tpu.memory_space<vmem>>, %arg3: memref<9x8x4xf32, #tpu.memory_space<vmem>>, %arg4: memref<8x1xf32, #tpu.memory_space<vmem>>, %arg5: memref<1x8x384xf32, #tpu.memory_space<vmem>>) attributes {dimension_semantics = [#tpu.dimension_semantics<parallel>, #tpu.dimension_semantics<parallel>], iteration_bounds = array<i64: 1, 2>, scalar_prefetch = 0 : i64, scratch_operands = 0 : i64, tpu.core_type = #tpu.core_type<tc>, window_params = [{transform_indices = @transform_0, window_bounds = array<i64: 1, 4, 512>}, {transform_indices = @transform_1, window_bounds = array<i64: 9, 8, 4>}, {transform_indices = @transform_2, window_bounds = array<i64: 8, 1>}, {transform_indices = @transform_3, window_bounds = array<i64: 1, 8, 384>}]} {
    %c0 = arith.constant 0 : index
    %c0_0 = arith.constant 0 : index
    %c0_1 = arith.constant 0 : index
    %0 = vector.load %arg2[%c0, %c0_0, %c0_1] : memref<1x4x512xf32, #tpu.memory_space<vmem>>, vector<1x4x512xf32>
    %1 = vector.shape_cast %0 : vector<1x4x512xf32> to vector<4x512xf32>
    %2 = vector.extract_strided_slice %1 {offsets = [0, 0], sizes = [4, 384], strides = [1, 1]} : vector<4x512xf32> to vector<4x384xf32>
    %c0_2 = arith.constant 0 : index
    %c0_3 = arith.constant 0 : index
    %c0_4 = arith.constant 0 : index
    %3 = vector.load %arg3[%c0_2, %c0_3, %c0_4] : memref<9x8x4xf32, #tpu.memory_space<vmem>>, vector<1x8x4xf32>
    %4 = vector.shape_cast %3 : vector<1x8x4xf32> to vector<8x4xf32>
    %cst = arith.constant dense<0.000000e+00> : vector<8x384xf32>
    %5 = tpu.matmul %4, %2, %cst {dimension_numbers = #tpu.dot_dimension_numbers<[1], [0], [0], [1], [0, 0, 1, 1], [], []>} : vector<8x4xf32>, vector<4x384xf32>, vector<8x384xf32> -> vector<8x384xf32>
    %6 = vector.extract_strided_slice %1 {offsets = [0, 1], sizes = [4, 384], strides = [1, 1]} : vector<4x512xf32> to vector<4x384xf32>
    %c1 = arith.constant 1 : index
    %c0_5 = arith.constant 0 : index
    %c0_6 = arith.constant 0 : index
    %7 = vector.load %arg3[%c1, %c0_5, %c0_6] : memref<9x8x4xf32, #tpu.memory_space<vmem>>, vector<1x8x4xf32>
    %8 = vector.shape_cast %7 : vector<1x8x4xf32> to vector<8x4xf32>
    %cst_7 = arith.constant dense<0.000000e+00> : vector<8x384xf32>
    %9 = tpu.matmul %8, %6, %cst_7 {dimension_numbers = #tpu.dot_dimension_numbers<[1], [0], [0], [1], [0, 0, 1, 1], [], []>} : vector<8x4xf32>, vector<4x384xf32>, vector<8x384xf32> -> vector<8x384xf32>
    %10 = arith.addf %5, %9 : vector<8x384xf32>
    %11 = vector.extract_strided_slice %1 {offsets = [0, 2], sizes = [4, 384], strides = [1, 1]} : vector<4x512xf32> to vector<4x384xf32>
    %c2 = arith.constant 2 : index
    %c0_8 = arith.constant 0 : index
    %c0_9 = arith.constant 0 : index
    %12 = vector.load %arg3[%c2, %c0_8, %c0_9] : memref<9x8x4xf32, #tpu.memory_space<vmem>>, vector<1x8x4xf32>
    %13 = vector.shape_cast %12 : vector<1x8x4xf32> to vector<8x4xf32>
    %cst_10 = arith.constant dense<0.000000e+00> : vector<8x384xf32>
    %14 = tpu.matmul %13, %11, %cst_10 {dimension_numbers = #tpu.dot_dimension_numbers<[1], [0], [0], [1], [0, 0, 1, 1], [], []>} : vector<8x4xf32>, vector<4x384xf32>, vector<8x384xf32> -> vector<8x384xf32>
    %15 = arith.addf %10, %14 : vector<8x384xf32>
    %16 = vector.extract_strided_slice %1 {offsets = [0, 18], sizes = [4, 384], strides = [1, 1]} : vector<4x512xf32> to vector<4x384xf32>
    %c3 = arith.constant 3 : index
    %c0_11 = arith.constant 0 : index
    %c0_12 = arith.constant 0 : index
    %17 = vector.load %arg3[%c3, %c0_11, %c0_12] : memref<9x8x4xf32, #tpu.memory_space<vmem>>, vector<1x8x4xf32>
    %18 = vector.shape_cast %17 : vector<1x8x4xf32> to vector<8x4xf32>
    %cst_13 = arith.constant dense<0.000000e+00> : vector<8x384xf32>
    %19 = tpu.matmul %18, %16, %cst_13 {dimension_numbers = #tpu.dot_dimension_numbers<[1], [0], [0], [1], [0, 0, 1, 1], [], []>} : vector<8x4xf32>, vector<4x384xf32>, vector<8x384xf32> -> vector<8x384xf32>
    %20 = arith.addf %15, %19 : vector<8x384xf32>
    %21 = vector.extract_strided_slice %1 {offsets = [0, 19], sizes = [4, 384], strides = [1, 1]} : vector<4x512xf32> to vector<4x384xf32>
    %c4 = arith.constant 4 : index
    %c0_14 = arith.constant 0 : index
    %c0_15 = arith.constant 0 : index
    %22 = vector.load %arg3[%c4, %c0_14, %c0_15] : memref<9x8x4xf32, #tpu.memory_space<vmem>>, vector<1x8x4xf32>
    %23 = vector.shape_cast %22 : vector<1x8x4xf32> to vector<8x4xf32>
    %cst_16 = arith.constant dense<0.000000e+00> : vector<8x384xf32>
    %24 = tpu.matmul %23, %21, %cst_16 {dimension_numbers = #tpu.dot_dimension_numbers<[1], [0], [0], [1], [0, 0, 1, 1], [], []>} : vector<8x4xf32>, vector<4x384xf32>, vector<8x384xf32> -> vector<8x384xf32>
    %25 = arith.addf %20, %24 : vector<8x384xf32>
    %26 = vector.extract_strided_slice %1 {offsets = [0, 20], sizes = [4, 384], strides = [1, 1]} : vector<4x512xf32> to vector<4x384xf32>
    %c5 = arith.constant 5 : index
    %c0_17 = arith.constant 0 : index
    %c0_18 = arith.constant 0 : index
    %27 = vector.load %arg3[%c5, %c0_17, %c0_18] : memref<9x8x4xf32, #tpu.memory_space<vmem>>, vector<1x8x4xf32>
    %28 = vector.shape_cast %27 : vector<1x8x4xf32> to vector<8x4xf32>
    %cst_19 = arith.constant dense<0.000000e+00> : vector<8x384xf32>
    %29 = tpu.matmul %28, %26, %cst_19 {dimension_numbers = #tpu.dot_dimension_numbers<[1], [0], [0], [1], [0, 0, 1, 1], [], []>} : vector<8x4xf32>, vector<4x384xf32>, vector<8x384xf32> -> vector<8x384xf32>
    %30 = arith.addf %25, %29 : vector<8x384xf32>
    %31 = vector.extract_strided_slice %1 {offsets = [0, 36], sizes = [4, 384], strides = [1, 1]} : vector<4x512xf32> to vector<4x384xf32>
    %c6 = arith.constant 6 : index
    %c0_20 = arith.constant 0 : index
    %c0_21 = arith.constant 0 : index
    %32 = vector.load %arg3[%c6, %c0_20, %c0_21] : memref<9x8x4xf32, #tpu.memory_space<vmem>>, vector<1x8x4xf32>
    %33 = vector.shape_cast %32 : vector<1x8x4xf32> to vector<8x4xf32>
    %cst_22 = arith.constant dense<0.000000e+00> : vector<8x384xf32>
    %34 = tpu.matmul %33, %31, %cst_22 {dimension_numbers = #tpu.dot_dimension_numbers<[1], [0], [0], [1], [0, 0, 1, 1], [], []>} : vector<8x4xf32>, vector<4x384xf32>, vector<8x384xf32> -> vector<8x384xf32>
    %35 = arith.addf %30, %34 : vector<8x384xf32>
    %36 = vector.extract_strided_slice %1 {offsets = [0, 37], sizes = [4, 384], strides = [1, 1]} : vector<4x512xf32> to vector<4x384xf32>
    %c7 = arith.constant 7 : index
    %c0_23 = arith.constant 0 : index
    %c0_24 = arith.constant 0 : index
    %37 = vector.load %arg3[%c7, %c0_23, %c0_24] : memref<9x8x4xf32, #tpu.memory_space<vmem>>, vector<1x8x4xf32>
    %38 = vector.shape_cast %37 : vector<1x8x4xf32> to vector<8x4xf32>
    %cst_25 = arith.constant dense<0.000000e+00> : vector<8x384xf32>
    %39 = tpu.matmul %38, %36, %cst_25 {dimension_numbers = #tpu.dot_dimension_numbers<[1], [0], [0], [1], [0, 0, 1, 1], [], []>} : vector<8x4xf32>, vector<4x384xf32>, vector<8x384xf32> -> vector<8x384xf32>
    %40 = arith.addf %35, %39 : vector<8x384xf32>
    %41 = vector.extract_strided_slice %1 {offsets = [0, 38], sizes = [4, 384], strides = [1, 1]} : vector<4x512xf32> to vector<4x384xf32>
    %c8 = arith.constant 8 : index
    %c0_26 = arith.constant 0 : index
    %c0_27 = arith.constant 0 : index
    %42 = vector.load %arg3[%c8, %c0_26, %c0_27] : memref<9x8x4xf32, #tpu.memory_space<vmem>>, vector<1x8x4xf32>
    %43 = vector.shape_cast %42 : vector<1x8x4xf32> to vector<8x4xf32>
    %cst_28 = arith.constant dense<0.000000e+00> : vector<8x384xf32>
    %44 = tpu.matmul %43, %41, %cst_28 {dimension_numbers = #tpu.dot_dimension_numbers<[1], [0], [0], [1], [0, 0, 1, 1], [], []>} : vector<8x4xf32>, vector<4x384xf32>, vector<8x384xf32> -> vector<8x384xf32>
    %45 = arith.addf %40, %44 : vector<8x384xf32>
    %c0_29 = arith.constant 0 : index
    %c0_30 = arith.constant 0 : index
    %46 = vector.load %arg4[%c0_29, %c0_30] : memref<8x1xf32, #tpu.memory_space<vmem>>, vector<8x1xf32>
    %47 = vector.broadcast %46 : vector<8x1xf32> to vector<8x384xf32>
    %48 = arith.addf %45, %47 : vector<8x384xf32>
    %cst_31 = arith.constant 0.000000e+00 : f32
    %49 = vector.broadcast %cst_31 : f32 to vector<8x384xf32>
    %50 = arith.maximumf %48, %49 : vector<8x384xf32>
    %c0_32 = arith.constant 0 : index
    %c0_33 = arith.constant 0 : index
    %c0_34 = arith.constant 0 : index
    %51 = vector.load %arg5[%c0_32, %c0_33, %c0_34] : memref<1x8x384xf32, #tpu.memory_space<vmem>>, vector<1x8x384xf32>
    %52 = vector.shape_cast %51 : vector<1x8x384xf32> to vector<8x384xf32>
    %53 = vector.shape_cast %50 : vector<8x384xf32> to vector<1x8x384xf32>
    tpu.vector_store %arg5[%c0_32, %c0_33, %c0_34], %53 {strides = array<i32>} : memref<1x8x384xf32, #tpu.memory_space<vmem>>, vector<1x8x384xf32>,
    return
  }
  func.func @transform_0(%arg0: i32, %arg1: i32) -> (i32, i32, i32) {
    %c0_i32 = arith.constant 0 : i32
    %c0_i32_0 = arith.constant 0 : i32
    %c0_i32_1 = arith.constant 0 : i32
    return %arg1, %c0_i32, %c0_i32_0 : i32, i32, i32
  }
  func.func @transform_1(%arg0: i32, %arg1: i32) -> (i32, i32, i32) {
    %c0_i32 = arith.constant 0 : i32
    %c0_i32_0 = arith.constant 0 : i32
    %c0_i32_1 = arith.constant 0 : i32
    return %c0_i32, %arg0, %c0_i32_0 : i32, i32, i32
  }
  func.func @transform_2(%arg0: i32, %arg1: i32) -> (i32, i32) {
    %c0_i32 = arith.constant 0 : i32
    %c0_i32_0 = arith.constant 0 : i32
    return %arg0, %c0_i32 : i32, i32
  }
  func.func @transform_3(%arg0: i32, %arg1: i32) -> (i32, i32, i32) {
    %c0_i32 = arith.constant 0 : i32
    %c0_i32_0 = arith.constant 0 : i32
    return %arg1, %arg0, %c0_i32 : i32, i32, i32
  }
}

</mosaic_0001>

<llo_original>
// kernel: tpu_custom_call.1
$region0: #{tpu_custom_call.1}
  #allocation0 [shape = 'u32[]', space=smem, size = 0x4, offset = 0x4, fixed_abs, tag = 'smem constant byte address 0x4 - core index']
  #allocation1 [shape = 'u32[144,128]{1,0:T(1,128)}', space=vmem, size = 0x12000, scoped, tag = 'internal scratch']
  %s0 = inlined_call_operand.vmem [shape: f32[2,4,512], index: 0, kind: input, shape index: {}]
  %s1 = inlined_call_operand.vmem [shape: f32[9,8,4], index: 1, kind: input, shape index: {}]
  %s2 = inlined_call_operand.vmem [shape: f32[8,1], index: 2, kind: input, shape index: {}]
  %s3 = inlined_call_operand.hbm [shape: f32[2,8,384], index: 3, kind: output, shape index: {}]
  %s4 = sld [smem:[#allocation0]]
  $region45: #{tpu_custom_call.1} parent=0
    _
  %s6 = ssub.s32 1, %s4
  %s7 = scalar_select 0, %s6, %s4
  $region1: #{tpu_custom_call.1} parent=0
    #allocation2 [shape = 'u8[24576]{0}', space=vmem, size = 0x6000, scoped, tag = 'output window, operand 0']
    #allocation3 [shape = 's32[2]{0}', space=sflag, size = 0x8, scoped, tag = 'scoped memory for tpu_custom_call.1']
    %8 = vsyncpa [#allocation3], 0
    %s9 = scalar_lea.sflag [#allocation3], 1
    %10 = vsyncpa %s9, 0
    loop: start=0, step=1, limit=4
    $region2: #{tpu_custom_call.1} parent=1 // loop_pre_header
      _
    $region3: #{tpu_custom_call.1} parent=1 // loop_header
      %s12 = sphi 0, %s16
      %p13 = scmp.ge.s32.totalorder %s12, 4
      %s19 = sphi 0, %s31
      %s20 = sphi 0, %s27
      %s21 = sphi 0, %s19
      %s22 = sphi 0, %s20
      %s23 = sphi 0, %s21
      %s24 = sphi 0, %s22
      %s34 = sphi 0, %s36
      %s37 = sphi 0, %s34
      %s38 = sphi 0, %s37
      %s54 = sphi 0, %s38
      %s60 = sphi 0, %s62
      %s63 = sphi 0, %s60
      %s64 = sphi 0, %s63
      %s80 = sphi 0, %s64
      %s86 = sphi 0, %s88
      %s89 = sphi 0, %s86
      %s90 = sphi 0, %s89
      %s106 = sphi 0, %s90
      %s114 = sphi 0, %s116
      %s117 = sphi 0, %s114
      %s118 = sphi 0, %s117
      %s134 = sphi 0, %s118
    $region4: #{tpu_custom_call.1} parent=1 // loop_header_branch
      %15 = sbr.rel (%p13) target = $region8
    $region5: #{tpu_custom_call.1} parent=1 // loop_body
      %s17 = ssub.s32 %s12, 1
      %s18 = ssub.s32 %s12, 2
      %s25 = sadd.s32 1, %s20
      %p26 = scmp.ge.s32.totalorder %s25, 2
      %s27 = scalar_select %p26, 0, %s25
      %s28 = sadd.s32 1, %s19
      %s29 = scalar_select %p26, %s28, %s19
      %p30 = scmp.ge.s32.totalorder %s29, 1
      %s31 = scalar_select %p30, 0, %s29
      %s32 = ssub.s32 %s20, %s27
      %p33 = scmp.eq.s32.totalorder %s32, 0
      %s35 = sadd.s32 %s34, 1
      %s36 = scalar_select %p33, %s34, %s35
      %p39 = pneg %p33
      %p40 = scmp.eq.s32.totalorder %s12, 1
      %p41 = por %p39, %p40
      %p42 = scmp.ne.s32.totalorder %s34, %s37
      %p43 = scmp.eq.s32.totalorder %s12, 0
      %p44 = por %p42, %p43
      %p45 = scmp.ne.s32.totalorder %s34, %s37
      %p46 = scmp.eq.s32.totalorder %s17, 1
      %p47 = por %p45, %p46
      %p48 = scmp.ne.s32.totalorder %s37, %s38
      %p49 = scmp.eq.s32.totalorder %s17, 0
      %p50 = por %p48, %p49
      %p51 = scmp.ne.s32.totalorder %s37, %s38
      %p52 = scmp.eq.s32.totalorder %s18, 1
      %p53 = por %p51, %p52
      %p55 = scmp.ne.s32.totalorder %s38, %s54
      %p56 = scmp.eq.s32.totalorder %s18, 0
      %p57 = por %p55, %p56
      %s58 = ssub.s32 %s19, %s31
      %p59 = scmp.eq.s32.totalorder %s58, 0
      %s61 = sadd.s32 %s60, 1
      %s62 = scalar_select %p59, %s60, %s61
      %p65 = pneg %p59
      %p66 = scmp.eq.s32.totalorder %s12, 1
      %p67 = por %p65, %p66
      %p68 = scmp.ne.s32.totalorder %s60, %s63
      %p69 = scmp.eq.s32.totalorder %s12, 0
      %p70 = por %p68, %p69
      %p71 = scmp.ne.s32.totalorder %s60, %s63
      %p72 = scmp.eq.s32.totalorder %s17, 1
      %p73 = por %p71, %p72
      %p74 = scmp.ne.s32.totalorder %s63, %s64
      %p75 = scmp.eq.s32.totalorder %s17, 0
      %p76 = por %p74, %p75
      %p77 = scmp.ne.s32.totalorder %s63, %s64
      %p78 = scmp.eq.s32.totalorder %s18, 1
      %p79 = por %p77, %p78
      %p81 = scmp.ne.s32.totalorder %s64, %s80
      %p82 = scmp.eq.s32.totalorder %s18, 0
      %p83 = por %p81, %p82
      %s84 = ssub.s32 %s19, %s31
      %p85 = scmp.eq.s32.totalorder %s84, 0
      %s87 = sadd.s32 %s86, 1
      %s88 = scalar_select %p85, %s86, %s87
      %p91 = pneg %p85
      %p92 = scmp.eq.s32.totalorder %s12, 1
      %p93 = por %p91, %p92
      %p94 = scmp.ne.s32.totalorder %s86, %s89
      %p95 = scmp.eq.s32.totalorder %s12, 0
      %p96 = por %p94, %p95
      %p97 = scmp.ne.s32.totalorder %s86, %s89
      %p98 = scmp.eq.s32.totalorder %s17, 1
      %p99 = por %p97, %p98
      %p100 = scmp.ne.s32.totalorder %s89, %s90
      %p101 = scmp.eq.s32.totalorder %s17, 0
      %p102 = por %p100, %p101
      %p103 = scmp.ne.s32.totalorder %s89, %s90
      %p104 = scmp.eq.s32.totalorder %s18, 1
      %p105 = por %p103, %p104
      %p107 = scmp.ne.s32.totalorder %s90, %s106
      %p108 = scmp.eq.s32.totalorder %s18, 0
      %p109 = por %p107, %p108
      %s110 = ssub.s32 %s20, %s27
      %s111 = ssub.s32 %s19, %s31
      %s112 = sor.u32 %s110, %s111
      %p113 = scmp.eq.s32.totalorder %s112, 0
      %s115 = sadd.s32 %s114, 1
      %s116 = scalar_select %p113, %s114, %s115
      %p119 = pneg %p113
      %p120 = scmp.eq.s32.totalorder %s12, 1
      %p121 = por %p119, %p120
      %p122 = scmp.ne.s32.totalorder %s114, %s117
      %p123 = scmp.eq.s32.totalorder %s12, 0
      %p124 = por %p122, %p123
      %p125 = scmp.ne.s32.totalorder %s114, %s117
      %p126 = scmp.eq.s32.totalorder %s17, 1
      %p127 = por %p125, %p126
      %p128 = scmp.ne.s32.totalorder %s117, %s118
      %p129 = scmp.eq.s32.totalorder %s17, 0
      %p130 = por %p128, %p129
      %p131 = scmp.ne.s32.totalorder %s117, %s118
      %p132 = scmp.eq.s32.totalorder %s18, 1
      %p133 = por %p131, %p132
      %p135 = scmp.ne.s32.totalorder %s118, %s134
      %p136 = scmp.eq.s32.totalorder %s18, 0
      %p137 = por %p135, %p136
      %p138 = scmp.le.s32.totalorder 1, %s12
      %p139 = scmp.lt.s32.totalorder %s12, 3
      %p140 = pnand %p138, %p139
      %p141 = pneg %p140
      // Predicated region
      $region9: #{tpu_custom_call.1} parent=5 // pred_check
        _
      $region10: #{tpu_custom_call.1} parent=5 // pred_check_branch
        %143 = sbr.rel (%p140) target = $region12
      $region11: #{tpu_custom_call.1} parent=5 // pred_region
        %s144 = ssub.s32 %s12, 1
        // Predicated region
        $region13: #{tpu_custom_call.1} parent=11 // pred_check
          %p145 = pneg %p76
        $region14: #{tpu_custom_call.1} parent=11 // pred_check_branch
          %147 = sbr.rel (%p145) target = $region16
        $region15: #{tpu_custom_call.1} parent=11 // pred_region
          %p148 = scmp.lt.s32.totalorder %s21, 0
          %s149 = scalar_select %p148, %s21, 0
          %s150 = smul.addr %s149, 8
          %s151 = scalar_lea.vmem %s1, %s150
        $region16: #{tpu_custom_call.1} parent=11 // pred_fallthru
          _
        // Predicated region
        $region17: #{tpu_custom_call.1} parent=11 // pred_check
          %p152 = pneg %p102
        $region18: #{tpu_custom_call.1} parent=11 // pred_check_branch
          %154 = sbr.rel (%p152) target = $region20
        $region19: #{tpu_custom_call.1} parent=11 // pred_region
          %p155 = scmp.lt.s32.totalorder %s21, 0
          %s156 = scalar_select %p155, %s21, 0
          %s157 = smul.addr %s156, 8
          %s158 = scalar_lea.vmem %s2, %s157
        $region20: #{tpu_custom_call.1} parent=11 // pred_fallthru
          _
      $region12: #{tpu_custom_call.1} parent=5 // pred_fallthru
        _
      %p159 = scmp.lt.s32.totalorder %s12, 2
      // Predicated region
      $region21: #{tpu_custom_call.1} parent=5 // pred_check
        %p160 = pneg %p159
      $region22: #{tpu_custom_call.1} parent=5 // pred_check_branch
        %162 = sbr.rel (%p160) target = $region24
      $region23: #{tpu_custom_call.1} parent=5 // pred_region
        // Predicated region
        $region25: #{tpu_custom_call.1} parent=23 // pred_check
          %p163 = pneg %p44
        $region26: #{tpu_custom_call.1} parent=23 // pred_check_branch
          %165 = sbr.rel (%p163) target = $region28
        $region27: #{tpu_custom_call.1} parent=23 // pred_region
          %p166 = scmp.lt.s32.totalorder %s20, 1
          %s167 = scalar_select %p166, %s20, 1
          %s168 = smul.addr %s167, 4
          %s169 = smul.addr %s168, 4
          %s170 = scalar_lea.vmem %s0, %s169
        $region28: #{tpu_custom_call.1} parent=23 // pred_fallthru
          _
      $region24: #{tpu_custom_call.1} parent=5 // pred_fallthru
        _
      %p171 = scmp.le.s32.totalorder 1, %s12
      %p172 = scmp.lt.s32.totalorder %s12, 3
      %p173 = pnand %p171, %p172
      %p174 = pneg %p173
      // Predicated region
      $region29: #{tpu_custom_call.1} parent=5 // pred_check
        _
      $region30: #{tpu_custom_call.1} parent=5 // pred_check_branch
        %176 = sbr.rel (%p173) target = $region32
      $region31: #{tpu_custom_call.1} parent=5 // pred_region
        %s177 = ssub.s32 %s12, 1
        %p178 = scmp.lt.s32.totalorder %s22, 1
        %s179 = scalar_select %p178, %s22, 1
        %s180 = smul.addr %s179, 4
        %s181 = smul.addr %s180, 4
        %s182 = scalar_lea.vmem %s0, %s181
        %p183 = pneg %p50
        %p184 = pneg %p47
        %p185 = scmp.lt.s32.totalorder %s21, 0
        %s186 = scalar_select %p185, %s21, 0
        %s187 = smul.addr %s186, 8
        %s188 = scalar_lea.vmem %s1, %s187
        %p189 = pneg %p76
        %p190 = pneg %p73
        %p191 = scmp.lt.s32.totalorder %s21, 0
        %s192 = scalar_select %p191, %s21, 0
        %s193 = smul.addr %s192, 8
        %s194 = scalar_lea.vmem %s2, %s193
        %p195 = pneg %p102
        %p196 = pneg %p99
        %p197 = pneg %p130
        %p198 = pneg %p127
        %s199 = sand.u32 %s117, 1
        %s200 = scalar_lea.sflag [#allocation3], %s199
        %s201 = sand.u32 %s117, 1
        %s202 = smul.addr %s201, 24
        %s203 = scalar_lea.vmem [#allocation2], %s202
        %p204 = scmp.lt.s32.totalorder %s22, 1
        %s205 = scalar_select %p204, %s22, 1
        %s206 = smul.addr %s205, 4
        %s207 = smul.addr %s206, 4
        %s208 = scalar_lea.vmem %s0, %s207
        %p209 = scmp.lt.s32.totalorder %s21, 0
        %s210 = scalar_select %p209, %s21, 0
        %s211 = smul.addr %s210, 8
        %s212 = scalar_lea.vmem %s1, %s211
        %p213 = scmp.lt.s32.totalorder %s21, 0
        %s214 = scalar_select %p213, %s21, 0
        %s215 = smul.addr %s214, 8
        %s216 = scalar_lea.vmem %s2, %s215
        %v217 = vld [vmem:[%s208] sm:$0xff]
        %v218 = vld [vmem:[%s208 + $0x8] sm:$0xff]
        %v219 = vld [vmem:[%s212] sm:$0xff]
        %s220 = scalar_lea.vmem %s212, 8
        %v221 = vld [vmem:[%s220] sm:$0xff]
        %v224 = vcombine.high %v217, %v217
        %v225 = vcombine.high %v218, %v218
        %226 = vrot.lane.b32.xlu0 %v217, 127
        %v227 = vpop.permute.xlu0 %226
        %228 = vrot.lane.b32.xlu0 %v224, 127
        %v229 = vpop.permute.xlu0 %228
        %230 = vrot.lane.b32.xlu0 %v218, 127
        %v231 = vpop.permute.xlu0 %230
        %232 = vrot.lane.b32.xlu0 %v225, 127
        %v233 = vpop.permute.xlu0 %232
        %vm234 = vcmask 1039360
        %v235 = vsel %vm234, %v227, %v229
        %v236 = vsel %vm234, %v229, %v231
        %v237 = vsel %vm234, %v231, %v233
        %vm238 = vcmask 31744
        %v240 = vsel %vm238, %v221, 0
        %vm242 = vcmask 1043456
        %v243 = vsel %vm242, %v235, 0
        %v245 = vsel %vm242, %v236, 0
        %v247 = vsel %vm242, %v237, 0
        %249 = vmatprep.subr.mxu0 %v245
        %250 = vmatpush1.msra.mxu0 %v243
        %251 = vmatprep.subr.mxu0 0.0
        %252 = vmatpush1.msra.mxu0 0.0
        %253 = vmatprep.subr.mxu0 0.0
        %254 = vmatpush1.msra.mxu0 0.0
        %255 = vmatprep.subr.mxu0 0.0
        %256 = vmatpush1.msra.mxu0 0.0
        %257 = vmatprep.subr.mxu0 0.0
        %258 = vmatpush1.msra.mxu0 0.0
        %259 = vmatprep.subr.mxu0 0.0
        %260 = vmatpush1.msra.mxu0 0.0
        %261 = vmatprep.subr.mxu0 0.0
        %262 = vmatpush1.msra.mxu0 0.0
        %263 = vmatprep.subr.mxu0 0.0
        %264 = vmatpush1.msra.mxu0 0.0
        %265 = vmatprep.subr.mxu0 0.0
        %266 = vmatpush1.msra.mxu0 0.0
        %267 = vmatprep.subr.mxu0 0.0
        %268 = vmatpush1.msra.mxu0 0.0
        %269 = vmatprep.subr.mxu0 0.0
        %270 = vmatpush1.msra.mxu0 0.0
        %271 = vmatprep.subr.mxu0 0.0
        %272 = vmatpush1.msra.mxu0 0.0
        %273 = vmatprep.subr.mxu0 0.0
        %274 = vmatpush1.msra.mxu0 0.0
        %275 = vmatprep.subr.mxu0 0.0
        %276 = vmatpush1.msra.mxu0 0.0
        %277 = vmatprep.subr.mxu0 0.0
        %278 = vmatpush1.msra.mxu0 0.0
        %279 = vmatprep.subr.mxu0 0.0
        %280 = vmatpush1.msra.mxu0 0.0
        %281 = vmatprep.subr.mxu0 0.0
        %282 = vmatpush1.msra.mxu0 0.0
        %283 = vmatprep.subr.mxu0 0.0
        %284 = vmatpush1.msra.mxu0 0.0
        %285 = vmatprep.subr.mxu0 0.0
        %286 = vmatpush1.msra.mxu0 0.0
        %287 = vmatprep.subr.mxu0 0.0
        %288 = vmatpush1.msra.mxu0 0.0
        %289 = vmatprep.subr.mxu0 0.0
        %290 = vmatpush1.msra.mxu0 0.0
        %291 = vmatprep.subr.mxu0 0.0
        %292 = vmatpush1.msra.mxu0 0.0
        %293 = vmatprep.subr.mxu0 0.0
        %294 = vmatpush1.msra.mxu0 0.0
        %295 = vmatprep.subr.mxu0 0.0
        %296 = vmatpush1.msra.mxu0 0.0
        %297 = vmatprep.subr.mxu0 0.0
        %298 = vmatpush1.msra.mxu0 0.0
        %299 = vmatprep.subr.mxu0 0.0
        %300 = vmatpush1.msra.mxu0 0.0
        %301 = vmatprep.subr.mxu0 0.0
        %302 = vmatpush1.msra.mxu0 0.0
        %303 = vmatprep.subr.mxu0 0.0
        %304 = vmatpush1.msra.mxu0 0.0
        %305 = vmatprep.subr.mxu0 0.0
        %306 = vmatpush1.msra.mxu0 0.0
        %307 = vmatprep.subr.mxu0 0.0
        %308 = vmatpush1.msra.mxu0 0.0
        %309 = vmatprep.subr.mxu0 0.0
        %310 = vmatpush1.msra.mxu0 0.0
        %311 = vmatprep.subr.mxu0 0.0
        %312 = vmatpush1.msra.mxu0 0.0
        %313 = vmatprep.mubr.f32.mxu0 0.0
        %314 = vmatmul.mubr.f32.gmra.mrb[0].mxu0 %v240
        %v315 = vpop.f32.mrb[0].mxu0
        %v316 = vadd.f32 0.0, %v315
        %v317 = vpop.f32.mrb[0].mxu0
        %v318 = vadd.f32 0.0, %v317
        %319 = vdwg.mxu0
        %320 = vmatprep.subr.mxu0 0.0
        %321 = vmatpush1.msra.mxu0 %v247
        %322 = vmatprep.subr.mxu0 0.0
        %323 = vmatpush1.msra.mxu0 0.0
        %324 = vmatprep.subr.mxu0 0.0
        %325 = vmatpush1.msra.mxu0 0.0
        %326 = vmatprep.subr.mxu0 0.0
        %327 = vmatpush1.msra.mxu0 0.0
        %328 = vmatprep.subr.mxu0 0.0
        %329 = vmatpush1.msra.mxu0 0.0
        %330 = vmatprep.subr.mxu0 0.0
        %331 = vmatpush1.msra.mxu0 0.0
        %332 = vmatprep.subr.mxu0 0.0
        %333 = vmatpush1.msra.mxu0 0.0
        %334 = vmatprep.subr.mxu0 0.0
        %335 = vmatpush1.msra.mxu0 0.0
        %336 = vmatprep.subr.mxu0 0.0
        %337 = vmatpush1.msra.mxu0 0.0
        %338 = vmatprep.subr.mxu0 0.0
        %339 = vmatpush1.msra.mxu0 0.0
        %340 = vmatprep.subr.mxu0 0.0
        %341 = vmatpush1.msra.mxu0 0.0
        %342 = vmatprep.subr.mxu0 0.0
        %343 = vmatpush1.msra.mxu0 0.0
        %344 = vmatprep.subr.mxu0 0.0
        %345 = vmatpush1.msra.mxu0 0.0
        %346 = vmatprep.subr.mxu0 0.0
        %347 = vmatpush1.msra.mxu0 0.0
        %348 = vmatprep.subr.mxu0 0.0
        %349 = vmatpush1.msra.mxu0 0.0
        %350 = vmatprep.subr.mxu0 0.0
        %351 = vmatpush1.msra.mxu0 0.0
        %352 = vmatprep.subr.mxu0 0.0
        %353 = vmatpush1.msra.mxu0 0.0
        %354 = vmatprep.subr.mxu0 0.0
        %355 = vmatpush1.msra.mxu0 0.0
        %356 = vmatprep.subr.mxu0 0.0
        %357 = vmatpush1.msra.mxu0 0.0
        %358 = vmatprep.subr.mxu0 0.0
        %359 = vmatpush1.msra.mxu0 0.0
        %360 = vmatprep.subr.mxu0 0.0
        %361 = vmatpush1.msra.mxu0 0.0
        %362 = vmatprep.subr.mxu0 0.0
        %363 = vmatpush1.msra.mxu0 0.0
        %364 = vmatprep.subr.mxu0 0.0
        %365 = vmatpush1.msra.mxu0 0.0
        %366 = vmatprep.subr.mxu0 0.0
        %367 = vmatpush1.msra.mxu0 0.0
        %368 = vmatprep.subr.mxu0 0.0
        %369 = vmatpush1.msra.mxu0 0.0
        %370 = vmatprep.subr.mxu0 0.0
        %371 = vmatpush1.msra.mxu0 0.0
        %372 = vmatprep.subr.mxu0 0.0
        %373 = vmatpush1.msra.mxu0 0.0
        %374 = vmatprep.subr.mxu0 0.0
        %375 = vmatpush1.msra.mxu0 0.0
        %376 = vmatprep.subr.mxu0 0.0
        %377 = vmatpush1.msra.mxu0 0.0
        %378 = vmatprep.subr.mxu0 0.0
        %379 = vmatpush1.msra.mxu0 0.0
        %380 = vmatprep.subr.mxu0 0.0
        %381 = vmatpush1.msra.mxu0 0.0
        %382 = vmatprep.subr.mxu0 0.0
        %383 = vmatpush1.msra.mxu0 0.0
        %384 = vmatprep.mubr.f32.mxu0 0.0
        %385 = vmatmul.mubr.f32.gmra.mrb[0].mxu0 %v240
        %v386 = vpop.f32.mrb[0].mxu0
        %v387 = vadd.f32 0.0, %v386
        %v388 = vpop.f32.mrb[0].mxu0
        %389 = vdwg.mxu0
        %v391 = vsel %vm238, %v219, 0
        %v393 = vsel %vm242, %v217, 0
        %v395 = vsel %vm242, %v224, 0
        %v397 = vsel %vm242, %v218, 0
        %399 = vmatprep.subr.mxu0 %v395
        %400 = vmatpush1.msra.mxu0 %v393
        %401 = vmatprep.subr.mxu0 0.0
        %402 = vmatpush1.msra.mxu0 0.0
        %403 = vmatprep.subr.mxu0 0.0
        %404 = vmatpush1.msra.mxu0 0.0
        %405 = vmatprep.subr.mxu0 0.0
        %406 = vmatpush1.msra.mxu0 0.0
        %407 = vmatprep.subr.mxu0 0.0
        %408 = vmatpush1.msra.mxu0 0.0
        %409 = vmatprep.subr.mxu0 0.0
        %410 = vmatpush1.msra.mxu0 0.0
        %411 = vmatprep.subr.mxu0 0.0
        %412 = vmatpush1.msra.mxu0 0.0
        %413 = vmatprep.subr.mxu0 0.0
        %414 = vmatpush1.msra.mxu0 0.0
        %415 = vmatprep.subr.mxu0 0.0
        %416 = vmatpush1.msra.mxu0 0.0
        %417 = vmatprep.subr.mxu0 0.0
        %418 = vmatpush1.msra.mxu0 0.0
        %419 = vmatprep.subr.mxu0 0.0
        %420 = vmatpush1.msra.mxu0 0.0
        %421 = vmatprep.subr.mxu0 0.0
        %422 = vmatpush1.msra.mxu0 0.0
        %423 = vmatprep.subr.mxu0 0.0
        %424 = vmatpush1.msra.mxu0 0.0
        %425 = vmatprep.subr.mxu0 0.0
        %426 = vmatpush1.msra.mxu0 0.0
        %427 = vmatprep.subr.mxu0 0.0
        %428 = vmatpush1.msra.mxu0 0.0
        %429 = vmatprep.subr.mxu0 0.0
        %430 = vmatpush1.msra.mxu0 0.0
        %431 = vmatprep.subr.mxu0 0.0
        %432 = vmatpush1.msra.mxu0 0.0
        %433 = vmatprep.subr.mxu0 0.0
        %434 = vmatpush1.msra.mxu0 0.0
        %435 = vmatprep.subr.mxu0 0.0
        %436 = vmatpush1.msra.mxu0 0.0
        %437 = vmatprep.subr.mxu0 0.0
        %438 = vmatpush1.msra.mxu0 0.0
        %439 = vmatprep.subr.mxu0 0.0
        %440 = vmatpush1.msra.mxu0 0.0
        %441 = vmatprep.subr.mxu0 0.0
        %442 = vmatpush1.msra.mxu0 0.0
        %443 = vmatprep.subr.mxu0 0.0
        %444 = vmatpush1.msra.mxu0 0.0
        %445 = vmatprep.subr.mxu0 0.0
        %446 = vmatpush1.msra.mxu0 0.0
        %447 = vmatprep.subr.mxu0 0.0
        %448 = vmatpush1.msra.mxu0 0.0
        %449 = vmatprep.subr.mxu0 0.0
        %450 = vmatpush1.msra.mxu0 0.0
        %451 = vmatprep.subr.mxu0 0.0
        %452 = vmatpush1.msra.mxu0 0.0
        %453 = vmatprep.subr.mxu0 0.0
        %454 = vmatpush1.msra.mxu0 0.0
        %455 = vmatprep.subr.mxu0 0.0
        %456 = vmatpush1.msra.mxu0 0.0
        %457 = vmatprep.subr.mxu0 0.0
        %458 = vmatpush1.msra.mxu0 0.0
        %459 = vmatprep.subr.mxu0 0.0
        %460 = vmatpush1.msra.mxu0 0.0
        %461 = vmatprep.subr.mxu0 0.0
        %462 = vmatpush1.msra.mxu0 0.0
        %463 = vmatprep.mubr.f32.mxu0 0.0
        %464 = vmatmul.mubr.f32.gmra.mrb[0].mxu0 %v391
        %v465 = vpop.f32.mrb[0].mxu0
        %v466 = vadd.f32 %v316, %v465
        %v467 = vpop.f32.mrb[0].mxu0
        %v468 = vadd.f32 %v318, %v467
        %469 = vdwg.mxu0
        %470 = vmatprep.subr.mxu0 0.0
        %471 = vmatpush1.msra.mxu0 %v397
        %472 = vmatprep.subr.mxu0 0.0
        %473 = vmatpush1.msra.mxu0 0.0
        %474 = vmatprep.subr.mxu0 0.0
        %475 = vmatpush1.msra.mxu0 0.0
        %476 = vmatprep.subr.mxu0 0.0
        %477 = vmatpush1.msra.mxu0 0.0
        %478 = vmatprep.subr.mxu0 0.0
        %479 = vmatpush1.msra.mxu0 0.0
        %480 = vmatprep.subr.mxu0 0.0
        %481 = vmatpush1.msra.mxu0 0.0
        %482 = vmatprep.subr.mxu0 0.0
        %483 = vmatpush1.msra.mxu0 0.0
        %484 = vmatprep.subr.mxu0 0.0
        %485 = vmatpush1.msra.mxu0 0.0
        %486 = vmatprep.subr.mxu0 0.0
        %487 = vmatpush1.msra.mxu0 0.0
        %488 = vmatprep.subr.mxu0 0.0
        %489 = vmatpush1.msra.mxu0 0.0
        %490 = vmatprep.subr.mxu0 0.0
        %491 = vmatpush1.msra.mxu0 0.0
        %492 = vmatprep.subr.mxu0 0.0
        %493 = vmatpush1.msra.mxu0 0.0
        %494 = vmatprep.subr.mxu0 0.0
        %495 = vmatpush1.msra.mxu0 0.0
        %496 = vmatprep.subr.mxu0 0.0
        %497 = vmatpush1.msra.mxu0 0.0
        %498 = vmatprep.subr.mxu0 0.0
        %499 = vmatpush1.msra.mxu0 0.0
        %500 = vmatprep.subr.mxu0 0.0
        %501 = vmatpush1.msra.mxu0 0.0
        %502 = vmatprep.subr.mxu0 0.0
        %503 = vmatpush1.msra.mxu0 0.0
        %504 = vmatprep.subr.mxu0 0.0
        %505 = vmatpush1.msra.mxu0 0.0
        %506 = vmatprep.subr.mxu0 0.0
        %507 = vmatpush1.msra.mxu0 0.0
        %508 = vmatprep.subr.mxu0 0.0
        %509 = vmatpush1.msra.mxu0 0.0
        %510 = vmatprep.subr.mxu0 0.0
        %511 = vmatpush1.msra.mxu0 0.0
        %512 = vmatprep.subr.mxu0 0.0
        %513 = vmatpush1.msra.mxu0 0.0
        %514 = vmatprep.subr.mxu0 0.0
        %515 = vmatpush1.msra.mxu0 0.0
        %516 = vmatprep.subr.mxu0 0.0
        %517 = vmatpush1.msra.mxu0 0.0
        %518 = vmatprep.subr.mxu0 0.0
        %519 = vmatpush1.msra.mxu0 0.0
        %520 = vmatprep.subr.mxu0 0.0
        %521 = vmatpush1.msra.mxu0 0.0
        %522 = vmatprep.subr.mxu0 0.0
        %523 = vmatpush1.msra.mxu0 0.0
        %524 = vmatprep.subr.mxu0 0.0
        %525 = vmatpush1.msra.mxu0 0.0
        %526 = vmatprep.subr.mxu0 0.0
        %527 = vmatpush1.msra.mxu0 0.0
        %528 = vmatprep.subr.mxu0 0.0
        %529 = vmatpush1.msra.mxu0 0.0
        %530 = vmatprep.subr.mxu0 0.0
        %531 = vmatpush1.msra.mxu0 0.0
        %532 = vmatprep.subr.mxu0 0.0
        %533 = vmatpush1.msra.mxu0 0.0
        %534 = vmatprep.mubr.f32.mxu0 0.0
        %535 = vmatmul.mubr.f32.gmra.mrb[0].mxu0 %v391
        %v536 = vpop.f32.mrb[0].mxu0
        %v537 = vadd.f32 %v387, %v536
        %v538 = vpop.f32.mrb[0].mxu0
        %539 = vdwg.mxu0
        %s540 = scalar_lea.vmem %s212, 16
        %v541 = vld [vmem:[%s540] sm:$0xff]
        %542 = vrot.lane.b32.xlu0 %v217, 126
        %v543 = vpop.permute.xlu0 %542
        %544 = vrot.lane.b32.xlu0 %v224, 126
        %v545 = vpop.permute.xlu0 %544
        %546 = vrot.lane.b32.xlu0 %v218, 126
        %v547 = vpop.permute.xlu0 %546
        %548 = vrot.lane.b32.xlu0 %v225, 126
        %v549 = vpop.permute.xlu0 %548
        %vm550 = vcmask 1031168
        %v551 = vsel %vm550, %v543, %v545
        %v552 = vsel %vm550, %v545, %v547
        %v553 = vsel %vm550, %v547, %v549
        %v555 = vsel %vm238, %v541, 0
        %v557 = vsel %vm242, %v551, 0
        %v559 = vsel %vm242, %v552, 0
        %v561 = vsel %vm242, %v553, 0
        %563 = vmatprep.subr.mxu0 %v559
        %564 = vmatpush1.msra.mxu0 %v557
        %565 = vmatprep.subr.mxu0 0.0
        %566 = vmatpush1.msra.mxu0 0.0
        %567 = vmatprep.subr.mxu0 0.0
        %568 = vmatpush1.msra.mxu0 0.0
        %569 = vmatprep.subr.mxu0 0.0
        %570 = vmatpush1.msra.mxu0 0.0
        %571 = vmatprep.subr.mxu0 0.0
        %572 = vmatpush1.msra.mxu0 0.0
        %573 = vmatprep.subr.mxu0 0.0
        %574 = vmatpush1.msra.mxu0 0.0
        %575 = vmatprep.subr.mxu0 0.0
        %576 = vmatpush1.msra.mxu0 0.0
        %577 = vmatprep.subr.mxu0 0.0
        %578 = vmatpush1.msra.mxu0 0.0
        %579 = vmatprep.subr.mxu0 0.0
        %580 = vmatpush1.msra.mxu0 0.0
        %581 = vmatprep.subr.mxu0 0.0
        %582 = vmatpush1.msra.mxu0 0.0
        %583 = vmatprep.subr.mxu0 0.0
        %584 = vmatpush1.msra.mxu0 0.0
        %585 = vmatprep.subr.mxu0 0.0
        %586 = vmatpush1.msra.mxu0 0.0
        %587 = vmatprep.subr.mxu0 0.0
        %588 = vmatpush1.msra.mxu0 0.0
        %589 = vmatprep.subr.mxu0 0.0
        %590 = vmatpush1.msra.mxu0 0.0
        %591 = vmatprep.subr.mxu0 0.0
        %592 = vmatpush1.msra.mxu0 0.0
        %593 = vmatprep.subr.mxu0 0.0
        %594 = vmatpush1.msra.mxu0 0.0
        %595 = vmatprep.subr.mxu0 0.0
        %596 = vmatpush1.msra.mxu0 0.0
        %597 = vmatprep.subr.mxu0 0.0
        %598 = vmatpush1.msra.mxu0 0.0
        %599 = vmatprep.subr.mxu0 0.0
        %600 = vmatpush1.msra.mxu0 0.0
        %601 = vmatprep.subr.mxu0 0.0
        %602 = vmatpush1.msra.mxu0 0.0
        %603 = vmatprep.subr.mxu0 0.0
        %604 = vmatpush1.msra.mxu0 0.0
        %605 = vmatprep.subr.mxu0 0.0
        %606 = vmatpush1.msra.mxu0 0.0
        %607 = vmatprep.subr.mxu0 0.0
        %608 = vmatpush1.msra.mxu0 0.0
        %609 = vmatprep.subr.mxu0 0.0
        %610 = vmatpush1.msra.mxu0 0.0
        %611 = vmatprep.subr.mxu0 0.0
        %612 = vmatpush1.msra.mxu0 0.0
        %613 = vmatprep.subr.mxu0 0.0
        %614 = vmatpush1.msra.mxu0 0.0
        %615 = vmatprep.subr.mxu0 0.0
        %616 = vmatpush1.msra.mxu0 0.0
        %617 = vmatprep.subr.mxu0 0.0
        %618 = vmatpush1.msra.mxu0 0.0
        %619 = vmatprep.subr.mxu0 0.0
        %620 = vmatpush1.msra.mxu0 0.0
        %621 = vmatprep.subr.mxu0 0.0
        %622 = vmatpush1.msra.mxu0 0.0
        %623 = vmatprep.subr.mxu0 0.0
        %624 = vmatpush1.msra.mxu0 0.0
        %625 = vmatprep.subr.mxu0 0.0
        %626 = vmatpush1.msra.mxu0 0.0
        %627 = vmatprep.mubr.f32.mxu0 0.0
        %628 = vmatmul.mubr.f32.gmra.mrb[0].mxu0 %v555
        %v629 = vpop.f32.mrb[0].mxu0
        %v630 = vadd.f32 0.0, %v629
        %v631 = vpop.f32.mrb[0].mxu0
        %v632 = vadd.f32 0.0, %v631
        %633 = vdwg.mxu0
        %634 = vmatprep.subr.mxu0 0.0
        %635 = vmatpush1.msra.mxu0 %v561
        %636 = vmatprep.subr.mxu0 0.0
        %637 = vmatpush1.msra.mxu0 0.0
        %638 = vmatprep.subr.mxu0 0.0
        %639 = vmatpush1.msra.mxu0 0.0
        %640 = vmatprep.subr.mxu0 0.0
        %641 = vmatpush1.msra.mxu0 0.0
        %642 = vmatprep.subr.mxu0 0.0
        %643 = vmatpush1.msra.mxu0 0.0
        %644 = vmatprep.subr.mxu0 0.0
        %645 = vmatpush1.msra.mxu0 0.0
        %646 = vmatprep.subr.mxu0 0.0
        %647 = vmatpush1.msra.mxu0 0.0
        %648 = vmatprep.subr.mxu0 0.0
        %649 = vmatpush1.msra.mxu0 0.0
        %650 = vmatprep.subr.mxu0 0.0
        %651 = vmatpush1.msra.mxu0 0.0
        %652 = vmatprep.subr.mxu0 0.0
        %653 = vmatpush1.msra.mxu0 0.0
        %654 = vmatprep.subr.mxu0 0.0
        %655 = vmatpush1.msra.mxu0 0.0
        %656 = vmatprep.subr.mxu0 0.0
        %657 = vmatpush1.msra.mxu0 0.0
        %658 = vmatprep.subr.mxu0 0.0
        %659 = vmatpush1.msra.mxu0 0.0
        %660 = vmatprep.subr.mxu0 0.0
        %661 = vmatpush1.msra.mxu0 0.0
        %662 = vmatprep.subr.mxu0 0.0
        %663 = vmatpush1.msra.mxu0 0.0
        %664 = vmatprep.subr.mxu0 0.0
        %665 = vmatpush1.msra.mxu0 0.0
        %666 = vmatprep.subr.mxu0 0.0
        %667 = vmatpush1.msra.mxu0 0.0
        %668 = vmatprep.subr.mxu0 0.0
        %669 = vmatpush1.msra.mxu0 0.0
        %670 = vmatprep.subr.mxu0 0.0
        %671 = vmatpush1.msra.mxu0 0.0
        %672 = vmatprep.subr.mxu0 0.0
        %673 = vmatpush1.msra.mxu0 0.0
        %674 = vmatprep.subr.mxu0 0.0
        %675 = vmatpush1.msra.mxu0 0.0
        %676 = vmatprep.subr.mxu0 0.0
        %677 = vmatpush1.msra.mxu0 0.0
        %678 = vmatprep.subr.mxu0 0.0
        %679 = vmatpush1.msra.mxu0 0.0
        %680 = vmatprep.subr.mxu0 0.0
        %681 = vmatpush1.msra.mxu0 0.0
        %682 = vmatprep.subr.mxu0 0.0
        %683 = vmatpush1.msra.mxu0 0.0
        %684 = vmatprep.subr.mxu0 0.0
        %685 = vmatpush1.msra.mxu0 0.0
        %686 = vmatprep.subr.mxu0 0.0
        %687 = vmatpush1.msra.mxu0 0.0
        %688 = vmatprep.subr.mxu0 0.0
        %689 = vmatpush1.msra.mxu0 0.0
        %690 = vmatprep.subr.mxu0 0.0
        %691 = vmatpush1.msra.mxu0 0.0
        %692 = vmatprep.subr.mxu0 0.0
        %693 = vmatpush1.msra.mxu0 0.0
        %694 = vmatprep.subr.mxu0 0.0
        %695 = vmatpush1.msra.mxu0 0.0
        %696 = vmatprep.subr.mxu0 0.0
        %697 = vmatpush1.msra.mxu0 0.0
        %698 = vmatprep.mubr.f32.mxu0 0.0
        %699 = vmatmul.mubr.f32.gmra.mrb[0].mxu0 %v555
        %v700 = vpop.f32.mrb[0].mxu0
        %v701 = vadd.f32 0.0, %v700
        %v702 = vpop.f32.mrb[0].mxu0
        %703 = vdwg.mxu0
        %v704 = vadd.f32 %v466, %v630
        %v705 = vadd.f32 %v468, %v632
        %v706 = vadd.f32 %v537, %v701
        %s707 = scalar_lea.vmem %s212, 24
        %v708 = vld [vmem:[%s707] sm:$0xff]
        %709 = vrot.lane.b32.xlu0 %v217, 110
        %v710 = vpop.permute.xlu0 %709
        %711 = vrot.lane.b32.xlu0 %v224, 110
        %v712 = vpop.permute.xlu0 %711
        %713 = vrot.lane.b32.xlu0 %v218, 110
        %v714 = vpop.permute.xlu0 %713
        %715 = vrot.lane.b32.xlu0 %v225, 110
        %v716 = vpop.permute.xlu0 %715
        %vm717 = vcmask 900096
        %v718 = vsel %vm717, %v710, %v712
        %v719 = vsel %vm717, %v712, %v714
        %v720 = vsel %vm717, %v714, %v716
        %v722 = vsel %vm238, %v708, 0
        %v724 = vsel %vm242, %v718, 0
        %v726 = vsel %vm242, %v719, 0
        %v728 = vsel %vm242, %v720, 0
        %730 = vmatprep.subr.mxu0 %v726
        %731 = vmatpush1.msra.mxu0 %v724
        %732 = vmatprep.subr.mxu0 0.0
        %733 = vmatpush1.msra.mxu0 0.0
        %734 = vmatprep.subr.mxu0 0.0
        %735 = vmatpush1.msra.mxu0 0.0
        %736 = vmatprep.subr.mxu0 0.0
        %737 = vmatpush1.msra.mxu0 0.0
        %738 = vmatprep.subr.mxu0 0.0
        %739 = vmatpush1.msra.mxu0 0.0
        %740 = vmatprep.subr.mxu0 0.0
        %741 = vmatpush1.msra.mxu0 0.0
        %742 = vmatprep.subr.mxu0 0.0
        %743 = vmatpush1.msra.mxu0 0.0
        %744 = vmatprep.subr.mxu0 0.0
        %745 = vmatpush1.msra.mxu0 0.0
        %746 = vmatprep.subr.mxu0 0.0
        %747 = vmatpush1.msra.mxu0 0.0
        %748 = vmatprep.subr.mxu0 0.0
        %749 = vmatpush1.msra.mxu0 0.0
        %750 = vmatprep.subr.mxu0 0.0
        %751 = vmatpush1.msra.mxu0 0.0
        %752 = vmatprep.subr.mxu0 0.0
        %753 = vmatpush1.msra.mxu0 0.0
        %754 = vmatprep.subr.mxu0 0.0
        %755 = vmatpush1.msra.mxu0 0.0
        %756 = vmatprep.subr.mxu0 0.0
        %757 = vmatpush1.msra.mxu0 0.0
        %758 = vmatprep.subr.mxu0 0.0
        %759 = vmatpush1.msra.mxu0 0.0
        %760 = vmatprep.subr.mxu0 0.0
        %761 = vmatpush1.msra.mxu0 0.0
        %762 = vmatprep.subr.mxu0 0.0
        %763 = vmatpush1.msra.mxu0 0.0
        %764 = vmatprep.subr.mxu0 0.0
        %765 = vmatpush1.msra.mxu0 0.0
        %766 = vmatprep.subr.mxu0 0.0
        %767 = vmatpush1.msra.mxu0 0.0
        %768 = vmatprep.subr.mxu0 0.0
        %769 = vmatpush1.msra.mxu0 0.0
        %770 = vmatprep.subr.mxu0 0.0
        %771 = vmatpush1.msra.mxu0 0.0
        %772 = vmatprep.subr.mxu0 0.0
        %773 = vmatpush1.msra.mxu0 0.0
        %774 = vmatprep.subr.mxu0 0.0
        %775 = vmatpush1.msra.mxu0 0.0
        %776 = vmatprep.subr.mxu0 0.0
        %777 = vmatpush1.msra.mxu0 0.0
        %778 = vmatprep.subr.mxu0 0.0
        %779 = vmatpush1.msra.mxu0 0.0
        %780 = vmatprep.subr.mxu0 0.0
        %781 = vmatpush1.msra.mxu0 0.0
        %782 = vmatprep.subr.mxu0 0.0
        %783 = vmatpush1.msra.mxu0 0.0
        %784 = vmatprep.subr.mxu0 0.0
        %785 = vmatpush1.msra.mxu0 0.0
        %786 = vmatprep.subr.mxu0 0.0
        %787 = vmatpush1.msra.mxu0 0.0
        %788 = vmatprep.subr.mxu0 0.0
        %789 = vmatpush1.msra.mxu0 0.0
        %790 = vmatprep.subr.mxu0 0.0
        %791 = vmatpush1.msra.mxu0 0.0
        %792 = vmatprep.subr.mxu0 0.0
        %793 = vmatpush1.msra.mxu0 0.0
        %794 = vmatprep.mubr.f32.mxu0 0.0
        %795 = vmatmul.mubr.f32.gmra.mrb[0].mxu0 %v722
        %v796 = vpop.f32.mrb[0].mxu0
        %v797 = vadd.f32 0.0, %v796
        %v798 = vpop.f32.mrb[0].mxu0
        %v799 = vadd.f32 0.0, %v798
        %800 = vdwg.mxu0
        %801 = vmatprep.subr.mxu0 0.0
        %802 = vmatpush1.msra.mxu0 %v728
        %803 = vmatprep.subr.mxu0 0.0
        %804 = vmatpush1.msra.mxu0 0.0
        %805 = vmatprep.subr.mxu0 0.0
        %806 = vmatpush1.msra.mxu0 0.0
        %807 = vmatprep.subr.mxu0 0.0
        %808 = vmatpush1.msra.mxu0 0.0
        %809 = vmatprep.subr.mxu0 0.0
        %810 = vmatpush1.msra.mxu0 0.0
        %811 = vmatprep.subr.mxu0 0.0
        %812 = vmatpush1.msra.mxu0 0.0
        %813 = vmatprep.subr.mxu0 0.0
        %814 = vmatpush1.msra.mxu0 0.0
        %815 = vmatprep.subr.mxu0 0.0
        %816 = vmatpush1.msra.mxu0 0.0
        %817 = vmatprep.subr.mxu0 0.0
        %818 = vmatpush1.msra.mxu0 0.0
        %819 = vmatprep.subr.mxu0 0.0
        %820 = vmatpush1.msra.mxu0 0.0
        %821 = vmatprep.subr.mxu0 0.0
        %822 = vmatpush1.msra.mxu0 0.0
        %823 = vmatprep.subr.mxu0 0.0
        %824 = vmatpush1.msra.mxu0 0.0
        %825 = vmatprep.subr.mxu0 0.0
        %826 = vmatpush1.msra.mxu0 0.0
        %827 = vmatprep.subr.mxu0 0.0
        %828 = vmatpush1.msra.mxu0 0.0
        %829 = vmatprep.subr.mxu0 0.0
        %830 = vmatpush1.msra.mxu0 0.0
        %831 = vmatprep.subr.mxu0 0.0
        %832 = vmatpush1.msra.mxu0 0.0
        %833 = vmatprep.subr.mxu0 0.0
        %834 = vmatpush1.msra.mxu0 0.0
        %835 = vmatprep.subr.mxu0 0.0
        %836 = vmatpush1.msra.mxu0 0.0
        %837 = vmatprep.subr.mxu0 0.0
        %838 = vmatpush1.msra.mxu0 0.0
        %839 = vmatprep.subr.mxu0 0.0
        %840 = vmatpush1.msra.mxu0 0.0
        %841 = vmatprep.subr.mxu0 0.0
        %842 = vmatpush1.msra.mxu0 0.0
        %843 = vmatprep.subr.mxu0 0.0
        %844 = vmatpush1.msra.mxu0 0.0
        %845 = vmatprep.subr.mxu0 0.0
        %846 = vmatpush1.msra.mxu0 0.0
        %847 = vmatprep.subr.mxu0 0.0
        %848 = vmatpush1.msra.mxu0 0.0
        %849 = vmatprep.subr.mxu0 0.0
        %850 = vmatpush1.msra.mxu0 0.0
        %851 = vmatprep.subr.mxu0 0.0
        %852 = vmatpush1.msra.mxu0 0.0
        %853 = vmatprep.subr.mxu0 0.0
        %854 = vmatpush1.msra.mxu0 0.0
        %855 = vmatprep.subr.mxu0 0.0
        %856 = vmatpush1.msra.mxu0 0.0
        %857 = vmatprep.subr.mxu0 0.0
        %858 = vmatpush1.msra.mxu0 0.0
        %859 = vmatprep.subr.mxu0 0.0
        %860 = vmatpush1.msra.mxu0 0.0
        %861 = vmatprep.subr.mxu0 0.0
        %862 = vmatpush1.msra.mxu0 0.0
        %863 = vmatprep.subr.mxu0 0.0
        %864 = vmatpush1.msra.mxu0 0.0
        %865 = vmatprep.mubr.f32.mxu0 0.0
        %866 = vmatmul.mubr.f32.gmra.mrb[0].mxu0 %v722
        %v867 = vpop.f32.mrb[0].mxu0
        %v868 = vadd.f32 0.0, %v867
        %v869 = vpop.f32.mrb[0].mxu0
        %870 = vdwg.mxu0
        %v871 = vadd.f32 %v704, %v797
        %v872 = vadd.f32 %v705, %v799
        %v873 = vadd.f32 %v706, %v868
        %s874 = scalar_lea.vmem %s212, 32
        %v875 = vld [vmem:[%s874] sm:$0xff]
        %876 = vrot.lane.b32.xlu0 %v217, 109
        %v877 = vpop.permute.xlu0 %876
        %878 = vrot.lane.b32.xlu0 %v224, 109
        %v879 = vpop.permute.xlu0 %878
        %880 = vrot.lane.b32.xlu0 %v218, 109
        %v881 = vpop.permute.xlu0 %880
        %882 = vrot.lane.b32.xlu0 %v225, 109
        %v883 = vpop.permute.xlu0 %882
        %vm884 = vcmask 891904
        %v885 = vsel %vm884, %v877, %v879
        %v886 = vsel %vm884, %v879, %v881
        %v887 = vsel %vm884, %v881, %v883
        %v889 = vsel %vm238, %v875, 0
        %v891 = vsel %vm242, %v885, 0
        %v893 = vsel %vm242, %v886, 0
        %v895 = vsel %vm242, %v887, 0
        %897 = vmatprep.subr.mxu0 %v893
        %898 = vmatpush1.msra.mxu0 %v891
        %899 = vmatprep.subr.mxu0 0.0
        %900 = vmatpush1.msra.mxu0 0.0
        %901 = vmatprep.subr.mxu0 0.0
        %902 = vmatpush1.msra.mxu0 0.0
        %903 = vmatprep.subr.mxu0 0.0
        %904 = vmatpush1.msra.mxu0 0.0
        %905 = vmatprep.subr.mxu0 0.0
        %906 = vmatpush1.msra.mxu0 0.0
        %907 = vmatprep.subr.mxu0 0.0
        %908 = vmatpush1.msra.mxu0 0.0
        %909 = vmatprep.subr.mxu0 0.0
        %910 = vmatpush1.msra.mxu0 0.0
        %911 = vmatprep.subr.mxu0 0.0
        %912 = vmatpush1.msra.mxu0 0.0
        %913 = vmatprep.subr.mxu0 0.0
        %914 = vmatpush1.msra.mxu0 0.0
        %915 = vmatprep.subr.mxu0 0.0
        %916 = vmatpush1.msra.mxu0 0.0
        %917 = vmatprep.subr.mxu0 0.0
        %918 = vmatpush1.msra.mxu0 0.0
        %919 = vmatprep.subr.mxu0 0.0
        %920 = vmatpush1.msra.mxu0 0.0
        %921 = vmatprep.subr.mxu0 0.0
        %922 = vmatpush1.msra.mxu0 0.0
        %923 = vmatprep.subr.mxu0 0.0
        %924 = vmatpush1.msra.mxu0 0.0
        %925 = vmatprep.subr.mxu0 0.0
        %926 = vmatpush1.msra.mxu0 0.0
        %927 = vmatprep.subr.mxu0 0.0
        %928 = vmatpush1.msra.mxu0 0.0
        %929 = vmatprep.subr.mxu0 0.0
        %930 = vmatpush1.msra.mxu0 0.0
        %931 = vmatprep.subr.mxu0 0.0
        %932 = vmatpush1.msra.mxu0 0.0
        %933 = vmatprep.subr.mxu0 0.0
        %934 = vmatpush1.msra.mxu0 0.0
        %935 = vmatprep.subr.mxu0 0.0
        %936 = vmatpush1.msra.mxu0 0.0
        %937 = vmatprep.subr.mxu0 0.0
        %938 = vmatpush1.msra.mxu0 0.0
        %939 = vmatprep.subr.mxu0 0.0
        %940 = vmatpush1.msra.mxu0 0.0
        %941 = vmatprep.subr.mxu0 0.0
        %942 = vmatpush1.msra.mxu0 0.0
        %943 = vmatprep.subr.mxu0 0.0
        %944 = vmatpush1.msra.mxu0 0.0
        %945 = vmatprep.subr.mxu0 0.0
        %946 = vmatpush1.msra.mxu0 0.0
        %947 = vmatprep.subr.mxu0 0.0
        %948 = vmatpush1.msra.mxu0 0.0
        %949 = vmatprep.subr.mxu0 0.0
        %950 = vmatpush1.msra.mxu0 0.0
        %951 = vmatprep.subr.mxu0 0.0
        %952 = vmatpush1.msra.mxu0 0.0
        %953 = vmatprep.subr.mxu0 0.0
        %954 = vmatpush1.msra.mxu0 0.0
        %955 = vmatprep.subr.mxu0 0.0
        %956 = vmatpush1.msra.mxu0 0.0
        %957 = vmatprep.subr.mxu0 0.0
        %958 = vmatpush1.msra.mxu0 0.0
        %959 = vmatprep.subr.mxu0 0.0
        %960 = vmatpush1.msra.mxu0 0.0
        %961 = vmatprep.mubr.f32.mxu0 0.0
        %962 = vmatmul.mubr.f32.gmra.mrb[0].mxu0 %v889
        %v963 = vpop.f32.mrb[0].mxu0
        %v964 = vadd.f32 0.0, %v963
        %v965 = vpop.f32.mrb[0].mxu0
        %v966 = vadd.f32 0.0, %v965
        %967 = vdwg.mxu0
        %968 = vmatprep.subr.mxu0 0.0
        %969 = vmatpush1.msra.mxu0 %v895
        %970 = vmatprep.subr.mxu0 0.0
        %971 = vmatpush1.msra.mxu0 0.0
        %972 = vmatprep.subr.mxu0 0.0
        %973 = vmatpush1.msra.mxu0 0.0
        %974 = vmatprep.subr.mxu0 0.0
        %975 = vmatpush1.msra.mxu0 0.0
        %976 = vmatprep.subr.mxu0 0.0
        %977 = vmatpush1.msra.mxu0 0.0
        %978 = vmatprep.subr.mxu0 0.0
        %979 = vmatpush1.msra.mxu0 0.0
        %980 = vmatprep.subr.mxu0 0.0
        %981 = vmatpush1.msra.mxu0 0.0
        %982 = vmatprep.subr.mxu0 0.0
        %983 = vmatpush1.msra.mxu0 0.0
        %984 = vmatprep.subr.mxu0 0.0
        %985 = vmatpush1.msra.mxu0 0.0
        %986 = vmatprep.subr.mxu0 0.0
        %987 = vmatpush1.msra.mxu0 0.0
        %988 = vmatprep.subr.mxu0 0.0
        %989 = vmatpush1.msra.mxu0 0.0
        %990 = vmatprep.subr.mxu0 0.0
        %991 = vmatpush1.msra.mxu0 0.0
        %992 = vmatprep.subr.mxu0 0.0
        %993 = vmatpush1.msra.mxu0 0.0
        %994 = vmatprep.subr.mxu0 0.0
        %995 = vmatpush1.msra.mxu0 0.0
        %996 = vmatprep.subr.mxu0 0.0
        %997 = vmatpush1.msra.mxu0 0.0
        %998 = vmatprep.subr.mxu0 0.0
        %999 = vmatpush1.msra.mxu0 0.0
        %1000 = vmatprep.subr.mxu0 0.0
        %1001 = vmatpush1.msra.mxu0 0.0
        %1002 = vmatprep.subr.mxu0 0.0
        %1003 = vmatpush1.msra.mxu0 0.0
        %1004 = vmatprep.subr.mxu0 0.0
        %1005 = vmatpush1.msra.mxu0 0.0
        %1006 = vmatprep.subr.mxu0 0.0
        %1007 = vmatpush1.msra.mxu0 0.0
        %1008 = vmatprep.subr.mxu0 0.0
        %1009 = vmatpush1.msra.mxu0 0.0
        %1010 = vmatprep.subr.mxu0 0.0
        %1011 = vmatpush1.msra.mxu0 0.0
        %1012 = vmatprep.subr.mxu0 0.0
        %1013 = vmatpush1.msra.mxu0 0.0
        %1014 = vmatprep.subr.mxu0 0.0
        %1015 = vmatpush1.msra.mxu0 0.0
        %1016 = vmatprep.subr.mxu0 0.0
        %1017 = vmatpush1.msra.mxu0 0.0
        %1018 = vmatprep.subr.mxu0 0.0
        %1019 = vmatpush1.msra.mxu0 0.0
        %1020 = vmatprep.subr.mxu0 0.0
        %1021 = vmatpush1.msra.mxu0 0.0
        %1022 = vmatprep.subr.mxu0 0.0
        %1023 = vmatpush1.msra.mxu0 0.0
        %1024 = vmatprep.subr.mxu0 0.0
        %1025 = vmatpush1.msra.mxu0 0.0
        %1026 = vmatprep.subr.mxu0 0.0
        %1027 = vmatpush1.msra.mxu0 0.0
        %1028 = vmatprep.subr.mxu0 0.0
        %1029 = vmatpush1.msra.mxu0 0.0
        %1030 = vmatprep.subr.mxu0 0.0
        %1031 = vmatpush1.msra.mxu0 0.0
        %1032 = vmatprep.mubr.f32.mxu0 0.0
        %1033 = vmatmul.mubr.f32.gmra.mrb[0].mxu0 %v889
        %v1034 = vpop.f32.mrb[0].mxu0
        %v1035 = vadd.f32 0.0, %v1034
        %v1036 = vpop.f32.mrb[0].mxu0
        %1037 = vdwg.mxu0
        %v1038 = vadd.f32 %v871, %v964
        %v1039 = vadd.f32 %v872, %v966
        %v1040 = vadd.f32 %v873, %v1035
        %s1041 = scalar_lea.vmem %s212, 40
        %v1042 = vld [vmem:[%s1041] sm:$0xff]
        %1043 = vrot.lane.b32.xlu0 %v217, 108
        %v1044 = vpop.permute.xlu0 %1043
        %1045 = vrot.lane.b32.xlu0 %v224, 108
        %v1046 = vpop.permute.xlu0 %1045
        %1047 = vrot.lane.b32.xlu0 %v218, 108
        %v1048 = vpop.permute.xlu0 %1047
        %1049 = vrot.lane.b32.xlu0 %v225, 108
        %v1050 = vpop.permute.xlu0 %1049
        %vm1051 = vcmask 883712
        %v1052 = vsel %vm1051, %v1044, %v1046
        %v1053 = vsel %vm1051, %v1046, %v1048
        %v1054 = vsel %vm1051, %v1048, %v1050
        %v1056 = vsel %vm238, %v1042, 0
        %v1058 = vsel %vm242, %v1052, 0
        %v1060 = vsel %vm242, %v1053, 0
        %v1062 = vsel %vm242, %v1054, 0
        %1064 = vmatprep.subr.mxu0 %v1060
        %1065 = vmatpush1.msra.mxu0 %v1058
        %1066 = vmatprep.subr.mxu0 0.0
        %1067 = vmatpush1.msra.mxu0 0.0
        %1068 = vmatprep.subr.mxu0 0.0
        %1069 = vmatpush1.msra.mxu0 0.0
        %1070 = vmatprep.subr.mxu0 0.0
        %1071 = vmatpush1.msra.mxu0 0.0
        %1072 = vmatprep.subr.mxu0 0.0
        %1073 = vmatpush1.msra.mxu0 0.0
        %1074 = vmatprep.subr.mxu0 0.0
        %1075 = vmatpush1.msra.mxu0 0.0
        %1076 = vmatprep.subr.mxu0 0.0
        %1077 = vmatpush1.msra.mxu0 0.0
        %1078 = vmatprep.subr.mxu0 0.0
        %1079 = vmatpush1.msra.mxu0 0.0
        %1080 = vmatprep.subr.mxu0 0.0
        %1081 = vmatpush1.msra.mxu0 0.0
        %1082 = vmatprep.subr.mxu0 0.0
        %1083 = vmatpush1.msra.mxu0 0.0
        %1084 = vmatprep.subr.mxu0 0.0
        %1085 = vmatpush1.msra.mxu0 0.0
        %1086 = vmatprep.subr.mxu0 0.0
        %1087 = vmatpush1.msra.mxu0 0.0
        %1088 = vmatprep.subr.mxu0 0.0
        %1089 = vmatpush1.msra.mxu0 0.0
        %1090 = vmatprep.subr.mxu0 0.0
        %1091 = vmatpush1.msra.mxu0 0.0
        %1092 = vmatprep.subr.mxu0 0.0
        %1093 = vmatpush1.msra.mxu0 0.0
        %1094 = vmatprep.subr.mxu0 0.0
        %1095 = vmatpush1.msra.mxu0 0.0
        %1096 = vmatprep.subr.mxu0 0.0
        %1097 = vmatpush1.msra.mxu0 0.0
        %1098 = vmatprep.subr.mxu0 0.0
        %1099 = vmatpush1.msra.mxu0 0.0
        %1100 = vmatprep.subr.mxu0 0.0
        %1101 = vmatpush1.msra.mxu0 0.0
        %1102 = vmatprep.subr.mxu0 0.0
        %1103 = vmatpush1.msra.mxu0 0.0
        %1104 = vmatprep.subr.mxu0 0.0
        %1105 = vmatpush1.msra.mxu0 0.0
        %1106 = vmatprep.subr.mxu0 0.0
        %1107 = vmatpush1.msra.mxu0 0.0
        %1108 = vmatprep.subr.mxu0 0.0
        %1109 = vmatpush1.msra.mxu0 0.0
        %1110 = vmatprep.subr.mxu0 0.0
        %1111 = vmatpush1.msra.mxu0 0.0
        %1112 = vmatprep.subr.mxu0 0.0
        %1113 = vmatpush1.msra.mxu0 0.0
        %1114 = vmatprep.subr.mxu0 0.0
        %1115 = vmatpush1.msra.mxu0 0.0
        %1116 = vmatprep.subr.mxu0 0.0
        %1117 = vmatpush1.msra.mxu0 0.0
        %1118 = vmatprep.subr.mxu0 0.0
        %1119 = vmatpush1.msra.mxu0 0.0
        %1120 = vmatprep.subr.mxu0 0.0
        %1121 = vmatpush1.msra.mxu0 0.0
        %1122 = vmatprep.subr.mxu0 0.0
        %1123 = vmatpush1.msra.mxu0 0.0
        %1124 = vmatprep.subr.mxu0 0.0
        %1125 = vmatpush1.msra.mxu0 0.0
        %1126 = vmatprep.subr.mxu0 0.0
        %1127 = vmatpush1.msra.mxu0 0.0
        %1128 = vmatprep.mubr.f32.mxu0 0.0
        %1129 = vmatmul.mubr.f32.gmra.mrb[0].mxu0 %v1056
        %v1130 = vpop.f32.mrb[0].mxu0
        %v1131 = vadd.f32 0.0, %v1130
        %v1132 = vpop.f32.mrb[0].mxu0
        %v1133 = vadd.f32 0.0, %v1132
        %1134 = vdwg.mxu0
        %1135 = vmatprep.subr.mxu0 0.0
        %1136 = vmatpush1.msra.mxu0 %v1062
        %1137 = vmatprep.subr.mxu0 0.0
        %1138 = vmatpush1.msra.mxu0 0.0
        %1139 = vmatprep.subr.mxu0 0.0
        %1140 = vmatpush1.msra.mxu0 0.0
        %1141 = vmatprep.subr.mxu0 0.0
        %1142 = vmatpush1.msra.mxu0 0.0
        %1143 = vmatprep.subr.mxu0 0.0
        %1144 = vmatpush1.msra.mxu0 0.0
        %1145 = vmatprep.subr.mxu0 0.0
        %1146 = vmatpush1.msra.mxu0 0.0
        %1147 = vmatprep.subr.mxu0 0.0
        %1148 = vmatpush1.msra.mxu0 0.0
        %1149 = vmatprep.subr.mxu0 0.0
        %1150 = vmatpush1.msra.mxu0 0.0
        %1151 = vmatprep.subr.mxu0 0.0
        %1152 = vmatpush1.msra.mxu0 0.0
        %1153 = vmatprep.subr.mxu0 0.0
        %1154 = vmatpush1.msra.mxu0 0.0
        %1155 = vmatprep.subr.mxu0 0.0
        %1156 = vmatpush1.msra.mxu0 0.0
        %1157 = vmatprep.subr.mxu0 0.0
        %1158 = vmatpush1.msra.mxu0 0.0
        %1159 = vmatprep.subr.mxu0 0.0
        %1160 = vmatpush1.msra.mxu0 0.0
        %1161 = vmatprep.subr.mxu0 0.0
        %1162 = vmatpush1.msra.mxu0 0.0
        %1163 = vmatprep.subr.mxu0 0.0
        %1164 = vmatpush1.msra.mxu0 0.0
        %1165 = vmatprep.subr.mxu0 0.0
        %1166 = vmatpush1.msra.mxu0 0.0
        %1167 = vmatprep.subr.mxu0 0.0
        %1168 = vmatpush1.msra.mxu0 0.0
        %1169 = vmatprep.subr.mxu0 0.0
        %1170 = vmatpush1.msra.mxu0 0.0
        %1171 = vmatprep.subr.mxu0 0.0
        %1172 = vmatpush1.msra.mxu0 0.0
        %1173 = vmatprep.subr.mxu0 0.0
        %1174 = vmatpush1.msra.mxu0 0.0
        %1175 = vmatprep.subr.mxu0 0.0
        %1176 = vmatpush1.msra.mxu0 0.0
        %1177 = vmatprep.subr.mxu0 0.0
        %1178 = vmatpush1.msra.mxu0 0.0
        %1179 = vmatprep.subr.mxu0 0.0
        %1180 = vmatpush1.msra.mxu0 0.0
        %1181 = vmatprep.subr.mxu0 0.0
        %1182 = vmatpush1.msra.mxu0 0.0
        %1183 = vmatprep.subr.mxu0 0.0
        %1184 = vmatpush1.msra.mxu0 0.0
        %1185 = vmatprep.subr.mxu0 0.0
        %1186 = vmatpush1.msra.mxu0 0.0
        %1187 = vmatprep.subr.mxu0 0.0
        %1188 = vmatpush1.msra.mxu0 0.0
        %1189 = vmatprep.subr.mxu0 0.0
        %1190 = vmatpush1.msra.mxu0 0.0
        %1191 = vmatprep.subr.mxu0 0.0
        %1192 = vmatpush1.msra.mxu0 0.0
        %1193 = vmatprep.subr.mxu0 0.0
        %1194 = vmatpush1.msra.mxu0 0.0
        %1195 = vmatprep.subr.mxu0 0.0
        %1196 = vmatpush1.msra.mxu0 0.0
        %1197 = vmatprep.subr.mxu0 0.0
        %1198 = vmatpush1.msra.mxu0 0.0
        %1199 = vmatprep.mubr.f32.mxu0 0.0
        %1200 = vmatmul.mubr.f32.gmra.mrb[0].mxu0 %v1056
        %v1201 = vpop.f32.mrb[0].mxu0
        %v1202 = vadd.f32 0.0, %v1201
        %v1203 = vpop.f32.mrb[0].mxu0
        %1204 = vdwg.mxu0
        %v1205 = vadd.f32 %v1038, %v1131
        %v1206 = vadd.f32 %v1039, %v1133
        %v1207 = vadd.f32 %v1040, %v1202
        %s1208 = scalar_lea.vmem %s212, 48
        %v1209 = vld [vmem:[%s1208] sm:$0xff]
        %1210 = vrot.lane.b32.xlu0 %v217, 92
        %v1211 = vpop.permute.xlu0 %1210
        %1212 = vrot.lane.b32.xlu0 %v224, 92
        %v1213 = vpop.permute.xlu0 %1212
        %1214 = vrot.lane.b32.xlu0 %v218, 92
        %v1215 = vpop.permute.xlu0 %1214
        %1216 = vrot.lane.b32.xlu0 %v225, 92
        %v1217 = vpop.permute.xlu0 %1216
        %vm1218 = vcmask 752640
        %v1219 = vsel %vm1218, %v1211, %v1213
        %v1220 = vsel %vm1218, %v1213, %v1215
        %v1221 = vsel %vm1218, %v1215, %v1217
        %v1223 = vsel %vm238, %v1209, 0
        %v1225 = vsel %vm242, %v1219, 0
        %v1227 = vsel %vm242, %v1220, 0
        %v1229 = vsel %vm242, %v1221, 0
        %1231 = vmatprep.subr.mxu0 %v1227
        %1232 = vmatpush1.msra.mxu0 %v1225
        %1233 = vmatprep.subr.mxu0 0.0
        %1234 = vmatpush1.msra.mxu0 0.0
        %1235 = vmatprep.subr.mxu0 0.0
        %1236 = vmatpush1.msra.mxu0 0.0
        %1237 = vmatprep.subr.mxu0 0.0
        %1238 = vmatpush1.msra.mxu0 0.0
        %1239 = vmatprep.subr.mxu0 0.0
        %1240 = vmatpush1.msra.mxu0 0.0
        %1241 = vmatprep.subr.mxu0 0.0
        %1242 = vmatpush1.msra.mxu0 0.0
        %1243 = vmatprep.subr.mxu0 0.0
        %1244 = vmatpush1.msra.mxu0 0.0
        %1245 = vmatprep.subr.mxu0 0.0
        %1246 = vmatpush1.msra.mxu0 0.0
        %1247 = vmatprep.subr.mxu0 0.0
        %1248 = vmatpush1.msra.mxu0 0.0
        %1249 = vmatprep.subr.mxu0 0.0
        %1250 = vmatpush1.msra.mxu0 0.0
        %1251 = vmatprep.subr.mxu0 0.0
        %1252 = vmatpush1.msra.mxu0 0.0
        %1253 = vmatprep.subr.mxu0 0.0
        %1254 = vmatpush1.msra.mxu0 0.0
        %1255 = vmatprep.subr.mxu0 0.0
        %1256 = vmatpush1.msra.mxu0 0.0
        %1257 = vmatprep.subr.mxu0 0.0
        %1258 = vmatpush1.msra.mxu0 0.0
        %1259 = vmatprep.subr.mxu0 0.0
        %1260 = vmatpush1.msra.mxu0 0.0
        %1261 = vmatprep.subr.mxu0 0.0
        %1262 = vmatpush1.msra.mxu0 0.0
        %1263 = vmatprep.subr.mxu0 0.0
        %1264 = vmatpush1.msra.mxu0 0.0
        %1265 = vmatprep.subr.mxu0 0.0
        %1266 = vmatpush1.msra.mxu0 0.0
        %1267 = vmatprep.subr.mxu0 0.0
        %1268 = vmatpush1.msra.mxu0 0.0
        %1269 = vmatprep.subr.mxu0 0.0
        %1270 = vmatpush1.msra.mxu0 0.0
        %1271 = vmatprep.subr.mxu0 0.0
        %1272 = vmatpush1.msra.mxu0 0.0
        %1273 = vmatprep.subr.mxu0 0.0
        %1274 = vmatpush1.msra.mxu0 0.0
        %1275 = vmatprep.subr.mxu0 0.0
        %1276 = vmatpush1.msra.mxu0 0.0
        %1277 = vmatprep.subr.mxu0 0.0
        %1278 = vmatpush1.msra.mxu0 0.0
        %1279 = vmatprep.subr.mxu0 0.0
        %1280 = vmatpush1.msra.mxu0 0.0
        %1281 = vmatprep.subr.mxu0 0.0
        %1282 = vmatpush1.msra.mxu0 0.0
        %1283 = vmatprep.subr.mxu0 0.0
        %1284 = vmatpush1.msra.mxu0 0.0
        %1285 = vmatprep.subr.mxu0 0.0
        %1286 = vmatpush1.msra.mxu0 0.0
        %1287 = vmatprep.subr.mxu0 0.0
        %1288 = vmatpush1.msra.mxu0 0.0
        %1289 = vmatprep.subr.mxu0 0.0
        %1290 = vmatpush1.msra.mxu0 0.0
        %1291 = vmatprep.subr.mxu0 0.0
        %1292 = vmatpush1.msra.mxu0 0.0
        %1293 = vmatprep.subr.mxu0 0.0
        %1294 = vmatpush1.msra.mxu0 0.0
        %1295 = vmatprep.mubr.f32.mxu0 0.0
        %1296 = vmatmul.mubr.f32.gmra.mrb[0].mxu0 %v1223
        %v1297 = vpop.f32.mrb[0].mxu0
        %v1298 = vadd.f32 0.0, %v1297
        %v1299 = vpop.f32.mrb[0].mxu0
        %v1300 = vadd.f32 0.0, %v1299
        %1301 = vdwg.mxu0
        %1302 = vmatprep.subr.mxu0 0.0
        %1303 = vmatpush1.msra.mxu0 %v1229
        %1304 = vmatprep.subr.mxu0 0.0
        %1305 = vmatpush1.msra.mxu0 0.0
        %1306 = vmatprep.subr.mxu0 0.0
        %1307 = vmatpush1.msra.mxu0 0.0
        %1308 = vmatprep.subr.mxu0 0.0
        %1309 = vmatpush1.msra.mxu0 0.0
        %1310 = vmatprep.subr.mxu0 0.0
        %1311 = vmatpush1.msra.mxu0 0.0
        %1312 = vmatprep.subr.mxu0 0.0
        %1313 = vmatpush1.msra.mxu0 0.0
        %1314 = vmatprep.subr.mxu0 0.0
        %1315 = vmatpush1.msra.mxu0 0.0
        %1316 = vmatprep.subr.mxu0 0.0
        %1317 = vmatpush1.msra.mxu0 0.0
        %1318 = vmatprep.subr.mxu0 0.0
        %1319 = vmatpush1.msra.mxu0 0.0
        %1320 = vmatprep.subr.mxu0 0.0
        %1321 = vmatpush1.msra.mxu0 0.0
        %1322 = vmatprep.subr.mxu0 0.0
        %1323 = vmatpush1.msra.mxu0 0.0
        %1324 = vmatprep.subr.mxu0 0.0
        %1325 = vmatpush1.msra.mxu0 0.0
        %1326 = vmatprep.subr.mxu0 0.0
        %1327 = vmatpush1.msra.mxu0 0.0
        %1328 = vmatprep.subr.mxu0 0.0
        %1329 = vmatpush1.msra.mxu0 0.0
        %1330 = vmatprep.subr.mxu0 0.0
        %1331 = vmatpush1.msra.mxu0 0.0
        %1332 = vmatprep.subr.mxu0 0.0
        %1333 = vmatpush1.msra.mxu0 0.0
        %1334 = vmatprep.subr.mxu0 0.0
        %1335 = vmatpush1.msra.mxu0 0.0
        %1336 = vmatprep.subr.mxu0 0.0
        %1337 = vmatpush1.msra.mxu0 0.0
        %1338 = vmatprep.subr.mxu0 0.0
        %1339 = vmatpush1.msra.mxu0 0.0
        %1340 = vmatprep.subr.mxu0 0.0
        %1341 = vmatpush1.msra.mxu0 0.0
        %1342 = vmatprep.subr.mxu0 0.0
        %1343 = vmatpush1.msra.mxu0 0.0
        %1344 = vmatprep.subr.mxu0 0.0
        %1345 = vmatpush1.msra.mxu0 0.0
        %1346 = vmatprep.subr.mxu0 0.0
        %1347 = vmatpush1.msra.mxu0 0.0
        %1348 = vmatprep.subr.mxu0 0.0
        %1349 = vmatpush1.msra.mxu0 0.0
        %1350 = vmatprep.subr.mxu0 0.0
        %1351 = vmatpush1.msra.mxu0 0.0
        %1352 = vmatprep.subr.mxu0 0.0
        %1353 = vmatpush1.msra.mxu0 0.0
        %1354 = vmatprep.subr.mxu0 0.0
        %1355 = vmatpush1.msra.mxu0 0.0
        %1356 = vmatprep.subr.mxu0 0.0
        %1357 = vmatpush1.msra.mxu0 0.0
        %1358 = vmatprep.subr.mxu0 0.0
        %1359 = vmatpush1.msra.mxu0 0.0
        %1360 = vmatprep.subr.mxu0 0.0
        %1361 = vmatpush1.msra.mxu0 0.0
        %1362 = vmatprep.subr.mxu0 0.0
        %1363 = vmatpush1.msra.mxu0 0.0
        %1364 = vmatprep.subr.mxu0 0.0
        %1365 = vmatpush1.msra.mxu0 0.0
        %1366 = vmatprep.mubr.f32.mxu0 0.0
        %1367 = vmatmul.mubr.f32.gmra.mrb[0].mxu0 %v1223
        %v1368 = vpop.f32.mrb[0].mxu0
        %v1369 = vadd.f32 0.0, %v1368
        %v1370 = vpop.f32.mrb[0].mxu0
        %1371 = vdwg.mxu0
        %v1372 = vadd.f32 %v1205, %v1298
        %v1373 = vadd.f32 %v1206, %v1300
        %v1374 = vadd.f32 %v1207, %v1369
        %s1375 = scalar_lea.vmem %s212, 56
        %v1376 = vld [vmem:[%s1375] sm:$0xff]
        %1377 = vrot.lane.b32.xlu0 %v217, 91
        %v1378 = vpop.permute.xlu0 %1377
        %1379 = vrot.lane.b32.xlu0 %v224, 91
        %v1380 = vpop.permute.xlu0 %1379
        %1381 = vrot.lane.b32.xlu0 %v218, 91
        %v1382 = vpop.permute.xlu0 %1381
        %1383 = vrot.lane.b32.xlu0 %v225, 91
        %v1384 = vpop.permute.xlu0 %1383
        %vm1385 = vcmask 744448
        %v1386 = vsel %vm1385, %v1378, %v1380
        %v1387 = vsel %vm1385, %v1380, %v1382
        %v1388 = vsel %vm1385, %v1382, %v1384
        %v1390 = vsel %vm238, %v1376, 0
        %v1392 = vsel %vm242, %v1386, 0
        %v1394 = vsel %vm242, %v1387, 0
        %v1396 = vsel %vm242, %v1388, 0
        %1398 = vmatprep.subr.mxu0 %v1394
        %1399 = vmatpush1.msra.mxu0 %v1392
        %1400 = vmatprep.subr.mxu0 0.0
        %1401 = vmatpush1.msra.mxu0 0.0
        %1402 = vmatprep.subr.mxu0 0.0
        %1403 = vmatpush1.msra.mxu0 0.0
        %1404 = vmatprep.subr.mxu0 0.0
        %1405 = vmatpush1.msra.mxu0 0.0
        %1406 = vmatprep.subr.mxu0 0.0
        %1407 = vmatpush1.msra.mxu0 0.0
        %1408 = vmatprep.subr.mxu0 0.0
        %1409 = vmatpush1.msra.mxu0 0.0
        %1410 = vmatprep.subr.mxu0 0.0
        %1411 = vmatpush1.msra.mxu0 0.0
        %1412 = vmatprep.subr.mxu0 0.0
        %1413 = vmatpush1.msra.mxu0 0.0
        %1414 = vmatprep.subr.mxu0 0.0
        %1415 = vmatpush1.msra.mxu0 0.0
        %1416 = vmatprep.subr.mxu0 0.0
        %1417 = vmatpush1.msra.mxu0 0.0
        %1418 = vmatprep.subr.mxu0 0.0
        %1419 = vmatpush1.msra.mxu0 0.0
        %1420 = vmatprep.subr.mxu0 0.0
        %1421 = vmatpush1.msra.mxu0 0.0
        %1422 = vmatprep.subr.mxu0 0.0
        %1423 = vmatpush1.msra.mxu0 0.0
        %1424 = vmatprep.subr.mxu0 0.0
        %1425 = vmatpush1.msra.mxu0 0.0
        %1426 = vmatprep.subr.mxu0 0.0
        %1427 = vmatpush1.msra.mxu0 0.0
        %1428 = vmatprep.subr.mxu0 0.0
        %1429 = vmatpush1.msra.mxu0 0.0
        %1430 = vmatprep.subr.mxu0 0.0
        %1431 = vmatpush1.msra.mxu0 0.0
        %1432 = vmatprep.subr.mxu0 0.0
        %1433 = vmatpush1.msra.mxu0 0.0
        %1434 = vmatprep.subr.mxu0 0.0
        %1435 = vmatpush1.msra.mxu0 0.0
        %1436 = vmatprep.subr.mxu0 0.0
        %1437 = vmatpush1.msra.mxu0 0.0
        %1438 = vmatprep.subr.mxu0 0.0
        %1439 = vmatpush1.msra.mxu0 0.0
        %1440 = vmatprep.subr.mxu0 0.0
        %1441 = vmatpush1.msra.mxu0 0.0
        %1442 = vmatprep.subr.mxu0 0.0
        %1443 = vmatpush1.msra.mxu0 0.0
        %1444 = vmatprep.subr.mxu0 0.0
        %1445 = vmatpush1.msra.mxu0 0.0
        %1446 = vmatprep.subr.mxu0 0.0
        %1447 = vmatpush1.msra.mxu0 0.0
        %1448 = vmatprep.subr.mxu0 0.0
        %1449 = vmatpush1.msra.mxu0 0.0
        %1450 = vmatprep.subr.mxu0 0.0
        %1451 = vmatpush1.msra.mxu0 0.0
        %1452 = vmatprep.subr.mxu0 0.0
        %1453 = vmatpush1.msra.mxu0 0.0
        %1454 = vmatprep.subr.mxu0 0.0
        %1455 = vmatpush1.msra.mxu0 0.0
        %1456 = vmatprep.subr.mxu0 0.0
        %1457 = vmatpush1.msra.mxu0 0.0
        %1458 = vmatprep.subr.mxu0 0.0
        %1459 = vmatpush1.msra.mxu0 0.0
        %1460 = vmatprep.subr.mxu0 0.0
        %1461 = vmatpush1.msra.mxu0 0.0
        %1462 = vmatprep.mubr.f32.mxu0 0.0
        %1463 = vmatmul.mubr.f32.gmra.mrb[0].mxu0 %v1390
        %v1464 = vpop.f32.mrb[0].mxu0
        %v1465 = vadd.f32 0.0, %v1464
        %v1466 = vpop.f32.mrb[0].mxu0
        %v1467 = vadd.f32 0.0, %v1466
        %1468 = vdwg.mxu0
        %1469 = vmatprep.subr.mxu0 0.0
        %1470 = vmatpush1.msra.mxu0 %v1396
        %1471 = vmatprep.subr.mxu0 0.0
        %1472 = vmatpush1.msra.mxu0 0.0
        %1473 = vmatprep.subr.mxu0 0.0
        %1474 = vmatpush1.msra.mxu0 0.0
        %1475 = vmatprep.subr.mxu0 0.0
        %1476 = vmatpush1.msra.mxu0 0.0
        %1477 = vmatprep.subr.mxu0 0.0
        %1478 = vmatpush1.msra.mxu0 0.0
        %1479 = vmatprep.subr.mxu0 0.0
        %1480 = vmatpush1.msra.mxu0 0.0
        %1481 = vmatprep.subr.mxu0 0.0
        %1482 = vmatpush1.msra.mxu0 0.0
        %1483 = vmatprep.subr.mxu0 0.0
        %1484 = vmatpush1.msra.mxu0 0.0
        %1485 = vmatprep.subr.mxu0 0.0
        %1486 = vmatpush1.msra.mxu0 0.0
        %1487 = vmatprep.subr.mxu0 0.0
        %1488 = vmatpush1.msra.mxu0 0.0
        %1489 = vmatprep.subr.mxu0 0.0
        %1490 = vmatpush1.msra.mxu0 0.0
        %1491 = vmatprep.subr.mxu0 0.0
        %1492 = vmatpush1.msra.mxu0 0.0
        %1493 = vmatprep.subr.mxu0 0.0
        %1494 = vmatpush1.msra.mxu0 0.0
        %1495 = vmatprep.subr.mxu0 0.0
        %1496 = vmatpush1.msra.mxu0 0.0
        %1497 = vmatprep.subr.mxu0 0.0
        %1498 = vmatpush1.msra.mxu0 0.0
        %1499 = vmatprep.subr.mxu0 0.0
        %1500 = vmatpush1.msra.mxu0 0.0
        %1501 = vmatprep.subr.mxu0 0.0
        %1502 = vmatpush1.msra.mxu0 0.0
        %1503 = vmatprep.subr.mxu0 0.0
        %1504 = vmatpush1.msra.mxu0 0.0
        %1505 = vmatprep.subr.mxu0 0.0
        %1506 = vmatpush1.msra.mxu0 0.0
        %1507 = vmatprep.subr.mxu0 0.0
        %1508 = vmatpush1.msra.mxu0 0.0
        %1509 = vmatprep.subr.mxu0 0.0
        %1510 = vmatpush1.msra.mxu0 0.0
        %1511 = vmatprep.subr.mxu0 0.0
        %1512 = vmatpush1.msra.mxu0 0.0
        %1513 = vmatprep.subr.mxu0 0.0
        %1514 = vmatpush1.msra.mxu0 0.0
        %1515 = vmatprep.subr.mxu0 0.0
        %1516 = vmatpush1.msra.mxu0 0.0
        %1517 = vmatprep.subr.mxu0 0.0
        %1518 = vmatpush1.msra.mxu0 0.0
        %1519 = vmatprep.subr.mxu0 0.0
        %1520 = vmatpush1.msra.mxu0 0.0
        %1521 = vmatprep.subr.mxu0 0.0
        %1522 = vmatpush1.msra.mxu0 0.0
        %1523 = vmatprep.subr.mxu0 0.0
        %1524 = vmatpush1.msra.mxu0 0.0
        %1525 = vmatprep.subr.mxu0 0.0
        %1526 = vmatpush1.msra.mxu0 0.0
        %1527 = vmatprep.subr.mxu0 0.0
        %1528 = vmatpush1.msra.mxu0 0.0
        %1529 = vmatprep.subr.mxu0 0.0
        %1530 = vmatpush1.msra.mxu0 0.0
        %1531 = vmatprep.subr.mxu0 0.0
        %1532 = vmatpush1.msra.mxu0 0.0
        %1533 = vmatprep.mubr.f32.mxu0 0.0
        %1534 = vmatmul.mubr.f32.gmra.mrb[0].mxu0 %v1390
        %v1535 = vpop.f32.mrb[0].mxu0
        %v1536 = vadd.f32 0.0, %v1535
        %v1537 = vpop.f32.mrb[0].mxu0
        %1538 = vdwg.mxu0
        %v1539 = vadd.f32 %v1372, %v1465
        %v1540 = vadd.f32 %v1373, %v1467
        %v1541 = vadd.f32 %v1374, %v1536
        %s1542 = scalar_lea.vmem %s212, 64
        %v1543 = vld [vmem:[%s1542] sm:$0xff]
        %1544 = vrot.lane.b32.xlu0 %v217, 90
        %v1545 = vpop.permute.xlu0 %1544
        %1546 = vrot.lane.b32.xlu0 %v224, 90
        %v1547 = vpop.permute.xlu0 %1546
        %1548 = vrot.lane.b32.xlu0 %v218, 90
        %v1549 = vpop.permute.xlu0 %1548
        %1550 = vrot.lane.b32.xlu0 %v225, 90
        %v1551 = vpop.permute.xlu0 %1550
        %vm1552 = vcmask 736256
        %v1553 = vsel %vm1552, %v1545, %v1547
        %v1554 = vsel %vm1552, %v1547, %v1549
        %v1555 = vsel %vm1552, %v1549, %v1551
        %v1557 = vsel %vm238, %v1543, 0
        %v1559 = vsel %vm242, %v1553, 0
        %v1561 = vsel %vm242, %v1554, 0
        %v1563 = vsel %vm242, %v1555, 0
        %1565 = vmatprep.subr.mxu0 %v1561
        %1566 = vmatpush1.msra.mxu0 %v1559
        %1567 = vmatprep.subr.mxu0 0.0
        %1568 = vmatpush1.msra.mxu0 0.0
        %1569 = vmatprep.subr.mxu0 0.0
        %1570 = vmatpush1.msra.mxu0 0.0
        %1571 = vmatprep.subr.mxu0 0.0
        %1572 = vmatpush1.msra.mxu0 0.0
        %1573 = vmatprep.subr.mxu0 0.0
        %1574 = vmatpush1.msra.mxu0 0.0
        %1575 = vmatprep.subr.mxu0 0.0
        %1576 = vmatpush1.msra.mxu0 0.0
        %1577 = vmatprep.subr.mxu0 0.0
        %1578 = vmatpush1.msra.mxu0 0.0
        %1579 = vmatprep.subr.mxu0 0.0
        %1580 = vmatpush1.msra.mxu0 0.0
        %1581 = vmatprep.subr.mxu0 0.0
        %1582 = vmatpush1.msra.mxu0 0.0
        %1583 = vmatprep.subr.mxu0 0.0
        %1584 = vmatpush1.msra.mxu0 0.0
        %1585 = vmatprep.subr.mxu0 0.0
        %1586 = vmatpush1.msra.mxu0 0.0
        %1587 = vmatprep.subr.mxu0 0.0
        %1588 = vmatpush1.msra.mxu0 0.0
        %1589 = vmatprep.subr.mxu0 0.0
        %1590 = vmatpush1.msra.mxu0 0.0
        %1591 = vmatprep.subr.mxu0 0.0
        %1592 = vmatpush1.msra.mxu0 0.0
        %1593 = vmatprep.subr.mxu0 0.0
        %1594 = vmatpush1.msra.mxu0 0.0
        %1595 = vmatprep.subr.mxu0 0.0
        %1596 = vmatpush1.msra.mxu0 0.0
        %1597 = vmatprep.subr.mxu0 0.0
        %1598 = vmatpush1.msra.mxu0 0.0
        %1599 = vmatprep.subr.mxu0 0.0
        %1600 = vmatpush1.msra.mxu0 0.0
        %1601 = vmatprep.subr.mxu0 0.0
        %1602 = vmatpush1.msra.mxu0 0.0
        %1603 = vmatprep.subr.mxu0 0.0
        %1604 = vmatpush1.msra.mxu0 0.0
        %1605 = vmatprep.subr.mxu0 0.0
        %1606 = vmatpush1.msra.mxu0 0.0
        %1607 = vmatprep.subr.mxu0 0.0
        %1608 = vmatpush1.msra.mxu0 0.0
        %1609 = vmatprep.subr.mxu0 0.0
        %1610 = vmatpush1.msra.mxu0 0.0
        %1611 = vmatprep.subr.mxu0 0.0
        %1612 = vmatpush1.msra.mxu0 0.0
        %1613 = vmatprep.subr.mxu0 0.0
        %1614 = vmatpush1.msra.mxu0 0.0
        %1615 = vmatprep.subr.mxu0 0.0
        %1616 = vmatpush1.msra.mxu0 0.0
        %1617 = vmatprep.subr.mxu0 0.0
        %1618 = vmatpush1.msra.mxu0 0.0
        %1619 = vmatprep.subr.mxu0 0.0
        %1620 = vmatpush1.msra.mxu0 0.0
        %1621 = vmatprep.subr.mxu0 0.0
        %1622 = vmatpush1.msra.mxu0 0.0
        %1623 = vmatprep.subr.mxu0 0.0
        %1624 = vmatpush1.msra.mxu0 0.0
        %1625 = vmatprep.subr.mxu0 0.0
        %1626 = vmatpush1.msra.mxu0 0.0
        %1627 = vmatprep.subr.mxu0 0.0
        %1628 = vmatpush1.msra.mxu0 0.0
        %1629 = vmatprep.mubr.f32.mxu0 0.0
        %1630 = vmatmul.mubr.f32.gmra.mrb[0].mxu0 %v1557
        %v1631 = vpop.f32.mrb[0].mxu0
        %v1632 = vadd.f32 0.0, %v1631
        %v1633 = vpop.f32.mrb[0].mxu0
        %v1634 = vadd.f32 0.0, %v1633
        %1635 = vdwg.mxu0
        %1636 = vmatprep.subr.mxu0 0.0
        %1637 = vmatpush1.msra.mxu0 %v1563
        %1638 = vmatprep.subr.mxu0 0.0
        %1639 = vmatpush1.msra.mxu0 0.0
        %1640 = vmatprep.subr.mxu0 0.0
        %1641 = vmatpush1.msra.mxu0 0.0
        %1642 = vmatprep.subr.mxu0 0.0
        %1643 = vmatpush1.msra.mxu0 0.0
        %1644 = vmatprep.subr.mxu0 0.0
        %1645 = vmatpush1.msra.mxu0 0.0
        %1646 = vmatprep.subr.mxu0 0.0
        %1647 = vmatpush1.msra.mxu0 0.0
        %1648 = vmatprep.subr.mxu0 0.0
        %1649 = vmatpush1.msra.mxu0 0.0
        %1650 = vmatprep.subr.mxu0 0.0
        %1651 = vmatpush1.msra.mxu0 0.0
        %1652 = vmatprep.subr.mxu0 0.0
        %1653 = vmatpush1.msra.mxu0 0.0
        %1654 = vmatprep.subr.mxu0 0.0
        %1655 = vmatpush1.msra.mxu0 0.0
        %1656 = vmatprep.subr.mxu0 0.0
        %1657 = vmatpush1.msra.mxu0 0.0
        %1658 = vmatprep.subr.mxu0 0.0
        %1659 = vmatpush1.msra.mxu0 0.0
        %1660 = vmatprep.subr.mxu0 0.0
        %1661 = vmatpush1.msra.mxu0 0.0
        %1662 = vmatprep.subr.mxu0 0.0
        %1663 = vmatpush1.msra.mxu0 0.0
        %1664 = vmatprep.subr.mxu0 0.0
        %1665 = vmatpush1.msra.mxu0 0.0
        %1666 = vmatprep.subr.mxu0 0.0
        %1667 = vmatpush1.msra.mxu0 0.0
        %1668 = vmatprep.subr.mxu0 0.0
        %1669 = vmatpush1.msra.mxu0 0.0
        %1670 = vmatprep.subr.mxu0 0.0
        %1671 = vmatpush1.msra.mxu0 0.0
        %1672 = vmatprep.subr.mxu0 0.0
        %1673 = vmatpush1.msra.mxu0 0.0
        %1674 = vmatprep.subr.mxu0 0.0
        %1675 = vmatpush1.msra.mxu0 0.0
        %1676 = vmatprep.subr.mxu0 0.0
        %1677 = vmatpush1.msra.mxu0 0.0
        %1678 = vmatprep.subr.mxu0 0.0
        %1679 = vmatpush1.msra.mxu0 0.0
        %1680 = vmatprep.subr.mxu0 0.0
        %1681 = vmatpush1.msra.mxu0 0.0
        %1682 = vmatprep.subr.mxu0 0.0
        %1683 = vmatpush1.msra.mxu0 0.0
        %1684 = vmatprep.subr.mxu0 0.0
        %1685 = vmatpush1.msra.mxu0 0.0
        %1686 = vmatprep.subr.mxu0 0.0
        %1687 = vmatpush1.msra.mxu0 0.0
        %1688 = vmatprep.subr.mxu0 0.0
        %1689 = vmatpush1.msra.mxu0 0.0
        %1690 = vmatprep.subr.mxu0 0.0
        %1691 = vmatpush1.msra.mxu0 0.0
        %1692 = vmatprep.subr.mxu0 0.0
        %1693 = vmatpush1.msra.mxu0 0.0
        %1694 = vmatprep.subr.mxu0 0.0
        %1695 = vmatpush1.msra.mxu0 0.0
        %1696 = vmatprep.subr.mxu0 0.0
        %1697 = vmatpush1.msra.mxu0 0.0
        %1698 = vmatprep.subr.mxu0 0.0
        %1699 = vmatpush1.msra.mxu0 0.0
        %1700 = vmatprep.mubr.f32.mxu0 0.0
        %1701 = vmatmul.mubr.f32.gmra.mrb[0].mxu0 %v1557
        %v1702 = vpop.f32.mrb[0].mxu0
        %v1703 = vadd.f32 0.0, %v1702
        %v1704 = vpop.f32.mrb[0].mxu0
        %1705 = vdwg.mxu0
        %v1706 = vadd.f32 %v1539, %v1632
        %v1707 = vadd.f32 %v1540, %v1634
        %v1708 = vadd.f32 %v1541, %v1703
        %v1709 = vld [vmem:[%s216] sm:$0xff]
        %1711 = vset.pattern.permute.xlu0 0
        %1712 = vperm.xlu0 %1711, %v1709
        %v1713 = vpop.permute.xlu0 %1712
        %v1715 = vadd.f32 %v1706, %v1713
        %v1716 = vadd.f32 %v1707, %v1713
        %v1717 = vadd.f32 %v1708, %v1713
        %v1718 = vmax.f32 %v1715, 0.0
        %v1719 = vmax.f32 %v1716, 0.0
        %v1720 = vmax.f32 %v1717, 0.0
        %1721 = vst [vmem:[%s203] sm:$0xff] %v1718
        %1722 = vst [vmem:[%s203 + $0x8] sm:$0xff] %v1719
        %1723 = vst [vmem:[%s203 + $0x10] sm:$0xff] %v1720
        %s1724 = sand.u32 %s117, 1
        %s1725 = scalar_lea.sflag [#allocation3], %s1724
        %s1726 = sand.u32 %s117, 1
        %s1727 = smul.addr %s1726, 24
        %s1728 = scalar_lea.vmem [#allocation2], %s1727
        // Predicated region
        $region33: #{tpu_custom_call.1} parent=31 // pred_check
          %p1729 = pneg %p127
        $region34: #{tpu_custom_call.1} parent=31 // pred_check_branch
          %1731 = sbr.rel (%p1729) target = $region36
        $region35: #{tpu_custom_call.1} parent=31 // pred_region
          %s1733 = ssub.s32 384, 384
          %1734 = vsyncadd %s1725, %s1733
          %s1735 = smul.addr %s21, 3
          %s1736 = smul.addr %s22, 3
          %s1737 = sadd.s32 %s1735, %s1736
          %s1738 = smul.addr %s1737, 128
          %s1739 = scalar_lea.hbm %s3, %s1738
          %s1741 = sshll.u32 %s1728, 4
          %s1742 = int_to_ptr.vmem [resolvable:$true] %s1741
          %1744 = dma.vmem_to_hbm [thread:$0]  %s1742, 384, %s1739, %s1725
        $region36: #{tpu_custom_call.1} parent=31 // pred_fallthru
          _
      $region32: #{tpu_custom_call.1} parent=5 // pred_fallthru
        _
      %p1745 = scmp.le.s32.totalorder 2, %s12
      // Predicated region
      $region37: #{tpu_custom_call.1} parent=5 // pred_check
        %p1746 = pneg %p1745
      $region38: #{tpu_custom_call.1} parent=5 // pred_check_branch
        %1748 = sbr.rel (%p1746) target = $region40
      $region39: #{tpu_custom_call.1} parent=5 // pred_region
        %s1749 = ssub.s32 %s12, 2
        // Predicated region
        $region41: #{tpu_custom_call.1} parent=39 // pred_check
          %p1750 = pneg %p133
        $region42: #{tpu_custom_call.1} parent=39 // pred_check_branch
          %1752 = sbr.rel (%p1750) target = $region44
        $region43: #{tpu_custom_call.1} parent=39 // pred_region
          %s1753 = sand.u32 %s118, 1
          %s1754 = scalar_lea.sflag [#allocation3], %s1753
          %s1755 = sand.u32 %s118, 1
          %s1756 = smul.addr %s1755, 24
          %s1757 = scalar_lea.vmem [#allocation2], %s1756
          %1758 = dma.done %s1754, 384
        $region44: #{tpu_custom_call.1} parent=39 // pred_fallthru
          _
      $region40: #{tpu_custom_call.1} parent=5 // pred_fallthru
        _
    $region6: #{tpu_custom_call.1} parent=1 // loop_footer
      %s16 = sadd.s32 1, %s12
    $region7: #{tpu_custom_call.1} parent=1 // loop_footer_branch
      %11 = sbr.rel target = $region3
    $region8: #{tpu_custom_call.1} parent=1 // loop_exit
      _
    %1759 = vsyncpa [#allocation3], 1
    %s1760 = scalar_lea.sflag [#allocation3], 1
    %1761 = vsyncpa %s1760, 1

</llo_original>
